<compile_context>
chip_gen: v7x
topology: tpu7x:2x2x1
jax: 0.10.0
libtpu: 0.0.40
codegen_flags: <defaults>
</compile_context>

<pallas_src>
import functools

import jax
import jax.numpy as jnp
from jax.experimental import pallas as pl
from jax.experimental.pallas import tpu as pltpu

# ---- model hyper-params (small, consistent with the module's shapes) ----
VOCAB_SIZE = 50
EMBEDDING_SIZE = 32
HIDDEN_NUM = 32
LAYER_NUM = 2
OUTPUT_NUM = 1
BATCH_SIZE = 2
SEQ_LEN = 8


def _lstm_kernel(ids_ref,        # (seq*batch, 1) int32 token ids (seq-major)
                 emb_proj0_ref,  # (Vpad, 4H) f32   embedding @ W_ih0^T (padded)
                 b0_ref,         # (1, 4H) f32      b_ih0 + b_hh0
                 w_hh0_ref,      # (H, 4H) bf16     W_hh0^T
                 w_ih1_ref,      # (H, 4H) f32      W_ih1^T
                 b1_ref,         # (1, 4H) f32      b_ih1 + b_hh1
                 w_hh1_ref,      # (H, 4H) bf16     W_hh1^T
                 fc_w_ref,       # (1, H)  f32
                 fc_b_ref,       # (1, 1)  f32
                 out_ref,        # (8, 4H) f32 consolidated output slab
                 *, seq_len, batch, hidden):
    H = hidden
    SB = seq_len * batch
    vpad = emb_proj0_ref.shape[0]

    # ------------------------------------------------------------------
    # Fused embedding lookup + layer-0 input projection, OFF the critical
    # path: x_t @ W_ih0^T == one_hot(ids) @ (embedding @ W_ih0^T).
    # One (SB, Vpad) @ (Vpad, 4H) MXU matmul replaces the XLA gather and
    # all per-step input projections of layer 0.
    # ------------------------------------------------------------------
    ids = ids_ref[...]                                            # (SB, 1)
    lane_iota = jax.lax.broadcasted_iota(jnp.int32, (SB, vpad), 1)
    onehot = (ids == lane_iota).astype(jnp.float32)               # (SB, Vpad)
    gx0 = jnp.dot(onehot, emb_proj0_ref[...],
                  preferred_element_type=jnp.float32) + b0_ref[...]   # (SB, 4H)

    # recurrence weights (tiny, kept resident as bf16 MXU operands)
    w_hh0 = w_hh0_ref[...]                                        # (H, 4H) bf16
    w_hh1 = w_hh1_ref[...]                                        # (H, 4H) bf16

    def cell(gx_t, h_prev, c_prev, w_hh):
        # serial critical path per step: one tiny bf16 MXU matmul (K = H)
        # + f32 gate math (all VPU/EUP work stays f32 -> v5e friendly).
        gates = gx_t + jnp.dot(h_prev.astype(jnp.bfloat16), w_hh,
                               preferred_element_type=jnp.float32)  # (B, 4H)
        sig = jax.nn.sigmoid(gates)               # one full-width EUP pass
        i = sig[:, 0 * H:1 * H]
        f = sig[:, 1 * H:2 * H]
        o = sig[:, 3 * H:4 * H]
        g = jnp.tanh(gates[:, 2 * H:3 * H])
        c_new = f * c_prev + i * g
        h_new = o * jnp.tanh(c_new)
        return h_new, c_new

    z = jnp.zeros((batch, H), jnp.float32)

    # ---------------- layer 0: full time pass, state in registers --------
    h0, c0 = z, z
    h0_steps = []
    for t in range(seq_len):
        h0, c0 = cell(gx0[t * batch:(t + 1) * batch, :], h0, c0, w_hh0)
        h0_steps.append(h0)

    # ------- layer-1 input projection: one batched matmul over all t -----
    h0_all = jnp.concatenate(h0_steps, axis=0)                    # (SB, H)
    gx1 = jnp.dot(h0_all, w_ih1_ref[...],
                  preferred_element_type=jnp.float32) + b1_ref[...]   # (SB, 4H)

    # ---------------- layer 1: full time pass ----------------------------
    h1, c1 = z, z
    h1_steps = []
    for t in range(seq_len):
        h1, c1 = cell(gx1[t * batch:(t + 1) * batch, :], h1, c1, w_hh1)
        h1_steps.append(h1)

    # ------------------------------------------------------------------
    # fc + ReLU only for the rows actually consumed by PyTorch's
    # relu_out.view(batch, -1)[:, -1] (seq-major flat index (b+1)*seq - 1).
    # ------------------------------------------------------------------
    sel_rows = []
    for b in range(batch):
        k = (b + 1) * seq_len - 1
        t_sel, b_sel = k // batch, k % batch
        sel_rows.append(h1_steps[t_sel][b_sel:b_sel + 1, :])
    h_sel = jnp.concatenate(sel_rows, axis=0)                     # (batch, H)
    fc = jnp.sum(h_sel * fc_w_ref[...], axis=-1, keepdims=True) + fc_b_ref[...]
    final = jnp.maximum(fc, 0.0)                                  # (batch, 1)

    # ------------------------------------------------------------------
    # Consolidated lane-dense output slab, written with ONE unmasked store:
    #   rows [0, batch)        : [ h_n[0] | h_n[1] | c_n[0] | c_n[1] ]
    #   rows [batch, 2*batch)  : final value broadcast across lanes
    #   remaining rows         : zero padding (to 8 sublanes)
    # ------------------------------------------------------------------
    state_rows = jnp.concatenate([h0, h1, c0, c1], axis=-1)       # (batch, 4H)
    final_rows = jnp.broadcast_to(final, (batch, 4 * H))          # (batch, 4H)
    parts = [state_rows, final_rows]
    pad_rows = out_ref.shape[0] - 2 * batch
    if pad_rows > 0:
        parts.append(jnp.zeros((pad_rows, 4 * H), jnp.float32))
    out_ref[...] = jnp.concatenate(parts, axis=0)


def init_params(key):
    ks = jax.random.split(key, 12)
    s = 0.1
    H, E = HIDDEN_NUM, EMBEDDING_SIZE
    params = {
        "embedding": jax.random.normal(ks[0], (VOCAB_SIZE, E), jnp.float32) * s,
        # layer 0
        "w_ih0": jax.random.normal(ks[1], (4 * H, E), jnp.float32) * s,
        "w_hh0": jax.random.normal(ks[2], (4 * H, H), jnp.float32) * s,
        "b_ih0": jax.random.normal(ks[3], (4 * H,), jnp.float32) * s,
        "b_hh0": jax.random.normal(ks[4], (4 * H,), jnp.float32) * s,
        # layer 1
        "w_ih1": jax.random.normal(ks[5], (4 * H, H), jnp.float32) * s,
        "w_hh1": jax.random.normal(ks[6], (4 * H, H), jnp.float32) * s,
        "b_ih1": jax.random.normal(ks[7], (4 * H,), jnp.float32) * s,
        "b_hh1": jax.random.normal(ks[8], (4 * H,), jnp.float32) * s,
        # fc
        "fc_w": jax.random.normal(ks[9], (OUTPUT_NUM, H), jnp.float32) * s,
        "fc_b": jax.random.normal(ks[10], (OUTPUT_NUM,), jnp.float32) * s,
    }
    return params


def prepare_params(params):
    """One-time fusion/transposition of weights (cached alongside params)."""
    H = HIDDEN_NUM
    vpad = ((VOCAB_SIZE + 7) // 8) * 8
    # Fuse the embedding gather with layer-0's input projection:
    #   x_t @ W_ih0^T == one_hot(ids) @ (embedding @ W_ih0^T)
    emb_proj0 = params["embedding"] @ params["w_ih0"].T            # (V, 4H)
    emb_proj0 = jnp.pad(emb_proj0, ((0, vpad - VOCAB_SIZE), (0, 0)))
    fused = {
        "emb_proj0": emb_proj0.astype(jnp.float32),                # (Vpad, 4H)
        "b0": (params["b_ih0"] + params["b_hh0"]).reshape(1, 4 * H),
        "w_hh0": params["w_hh0"].T.astype(jnp.bfloat16),           # (H, 4H)
        "w_ih1": params["w_ih1"].T.astype(jnp.float32),            # (H, 4H)
        "b1": (params["b_ih1"] + params["b_hh1"]).reshape(1, 4 * H),
        "w_hh1": params["w_hh1"].T.astype(jnp.bfloat16),           # (H, 4H)
        "fc_w": params["fc_w"].reshape(1, H),
        "fc_b": params["fc_b"].reshape(1, 1),
    }
    return fused


@jax.jit
def lstm_model_forward(word_seq, fused):
    """word_seq: (seq_len, batch) int32.  Returns (relu_out_last, (h_n, c_n))."""
    seq_len, batch = word_seq.shape
    H = HIDDEN_NUM
    SB = seq_len * batch
    vpad = fused["emb_proj0"].shape[0]

    ids = word_seq.reshape(SB, 1).astype(jnp.int32)                # seq-major

    slab_rows = max(8, ((2 * batch + 7) // 8) * 8)

    kernel = functools.partial(_lstm_kernel, seq_len=seq_len, batch=batch,
                               hidden=H)
    vmem = lambda: pl.BlockSpec(memory_space=pltpu.MemorySpace.VMEM)

    # Advisory cost estimate (latency-bound kernel; helps XLA scheduling).
    flops = (2 * SB * vpad * 4 * H            # fused embedding/layer-0 proj
             + 2 * SB * H * 4 * H             # layer-1 input projection
             + 2 * LAYER_NUM * SB * H * 4 * H # serial hh matmuls
             + 2 * batch * H)                 # fc
    transcendentals = LAYER_NUM * SB * 6 * H  # sigmoid(4H) + 2*tanh(H) per cell
    bytes_accessed = int(
        ids.size * 4
        + sum(int(v.size) * v.dtype.itemsize for v in fused.values())
        + slab_rows * 4 * H * 4)

    slab = pl.pallas_call(
        kernel,
        out_shape=jax.ShapeDtypeStruct((slab_rows, 4 * H), jnp.float32),
        in_specs=[vmem() for _ in range(9)],
        out_specs=vmem(),
        cost_estimate=pl.CostEstimate(flops=flops,
                                      transcendentals=transcendentals,
                                      bytes_accessed=bytes_accessed),
    )(ids, fused["emb_proj0"], fused["b0"], fused["w_hh0"], fused["w_ih1"],
      fused["b1"], fused["w_hh1"], fused["fc_w"], fused["fc_b"])

    # Unpack the consolidated slab (trivial static slices).
    h_n = jnp.stack([slab[:batch, 0 * H:1 * H], slab[:batch, 1 * H:2 * H]])
    c_n = jnp.stack([slab[:batch, 2 * H:3 * H], slab[:batch, 3 * H:4 * H]])
    final = slab[batch:2 * batch, 0]                               # (batch,)
    return final, (h_n, c_n)


def _reference_forward(word_seq, params):
    """Pure-JAX f32 reference of the same forward pass (for a sanity check)."""
    H = HIDDEN_NUM
    x = jnp.take(params["embedding"], word_seq, axis=0)  # (seq, batch, E)
    batch = word_seq.shape[1]

    def cell(x_t, h, c, w_ih, w_hh, b_ih, b_hh):
        g = x_t @ w_ih.T + b_ih + h @ w_hh.T + b_hh
        i = jax.nn.sigmoid(g[:, 0 * H:1 * H])
        f = jax.nn.sigmoid(g[:, 1 * H:2 * H])
        gg = jnp.tanh(g[:, 2 * H:3 * H])
        o = jax.nn.sigmoid(g[:, 3 * H:4 * H])
        c = f * c + i * gg
        h = o * jnp.tanh(c)
        return h, c

    def step(carry, x_t):
        h0, c0, h1, c1 = carry
        h0, c0 = cell(x_t, h0, c0, params["w_ih0"], params["w_hh0"],
                      params["b_ih0"], params["b_hh0"])
        h1, c1 = cell(h0, h1, c1, params["w_ih1"], params["w_hh1"],
                      params["b_ih1"], params["b_hh1"])
        return (h0, c0, h1, c1), h1

    z = jnp.zeros((batch, H), jnp.float32)
    (h0, c0, h1, c1), outs = jax.lax.scan(step, (z, z, z, z), x)
    fc = outs.reshape(-1, H) @ params["fc_w"].T + params["fc_b"]
    relu = jnp.maximum(fc, 0.0)
    final = relu.reshape(BATCH_SIZE, -1)[:, -1]
    h_n = jnp.stack([h0, h1])
    c_n = jnp.stack([c0, c1])
    return final, (h_n, c_n)


if __name__ == "__main__":
    key = jax.random.PRNGKey(0)
    pkey, dkey = jax.random.split(key)
    params = init_params(pkey)
    fused = prepare_params(params)   # one-time weight fusion, cached

    # word_seq: (seq_len, batch) int32 token ids (nn.LSTM default seq-first)
    word_seq = jax.random.randint(dkey, (SEQ_LEN, BATCH_SIZE), 0, VOCAB_SIZE,
                                  dtype=jnp.int32)

    out, (h_n, c_n) = lstm_model_forward(word_seq, fused)
    out = jax.block_until_ready(out)
    h_n = jax.block_until_ready(h_n)
    c_n = jax.block_until_ready(c_n)

    # f32 reference; tolerance relaxed because the recurrent hh matmuls use
    # bf16 MXU operands (f32 accumulation / f32 gate math).
    ref_out, (ref_h, ref_c) = _reference_forward(word_seq, params)
    assert jnp.allclose(out, ref_out, atol=1e-2, rtol=1e-2)
    assert jnp.allclose(h_n, ref_h, atol=1e-2, rtol=1e-2)
    assert jnp.allclose(c_n, ref_c, atol=1e-2, rtol=1e-2)

    print("KERNEL_OK")
</pallas_src>

<mosaic_0001>
module attributes {stable_mosaic.version = 11 : i64} {
  func.func @_lstm_kernel(%arg0: memref<16x1xi32, #tpu.memory_space<vmem>>, %arg1: memref<56x128xf32, #tpu.memory_space<vmem>>, %arg2: memref<1x128xf32, #tpu.memory_space<vmem>>, %arg3: memref<32x128xbf16, #tpu.memory_space<vmem>>, %arg4: memref<32x128xf32, #tpu.memory_space<vmem>>, %arg5: memref<1x128xf32, #tpu.memory_space<vmem>>, %arg6: memref<32x128xbf16, #tpu.memory_space<vmem>>, %arg7: memref<1x32xf32, #tpu.memory_space<vmem>>, %arg8: memref<1x1xf32, #tpu.memory_space<vmem>>, %arg9: memref<8x128xf32, #tpu.memory_space<vmem>>) attributes {dimension_semantics = [], scalar_prefetch = 0 : i64, scratch_operands = 0 : i64, tpu.core_type = #tpu.core_type<tc>} {
    %c0 = arith.constant 0 : index
    %c0_0 = arith.constant 0 : index
    %0 = vector.load %arg0[%c0, %c0_0] : memref<16x1xi32, #tpu.memory_space<vmem>>, vector<16x1xi32>
    %1 = tpu.iota {dimensions = array<i32: 1>} : vector<16x56xi32>
    %2 = vector.broadcast %0 : vector<16x1xi32> to vector<16x56xi32>
    %3 = arith.cmpi eq, %2, %1 : vector<16x56xi32>
    %4 = arith.extui %3 : vector<16x56xi1> to vector<16x56xi32>
    %5 = arith.sitofp %4 : vector<16x56xi32> to vector<16x56xf32>
    %c0_1 = arith.constant 0 : index
    %c0_2 = arith.constant 0 : index
    %6 = vector.load %arg1[%c0_1, %c0_2] : memref<56x128xf32, #tpu.memory_space<vmem>>, vector<56x128xf32>
    %cst = arith.constant dense<0.000000e+00> : vector<16x128xf32>
    %7 = tpu.matmul %5, %6, %cst {dimension_numbers = #tpu.dot_dimension_numbers<[1], [0], [0], [1], [0, 0, 1, 1], [], []>} : vector<16x56xf32>, vector<56x128xf32>, vector<16x128xf32> -> vector<16x128xf32>
    %c0_3 = arith.constant 0 : index
    %c0_4 = arith.constant 0 : index
    %8 = vector.load %arg2[%c0_3, %c0_4] : memref<1x128xf32, #tpu.memory_space<vmem>>, vector<1x128xf32>
    %9 = vector.broadcast %8 : vector<1x128xf32> to vector<16x128xf32>
    %10 = arith.addf %7, %9 : vector<16x128xf32>
    %c0_5 = arith.constant 0 : index
    %c0_6 = arith.constant 0 : index
    %11 = vector.load %arg3[%c0_5, %c0_6] : memref<32x128xbf16, #tpu.memory_space<vmem>>, vector<32x128xbf16>
    %c0_7 = arith.constant 0 : index
    %c0_8 = arith.constant 0 : index
    %12 = vector.load %arg6[%c0_7, %c0_8] : memref<32x128xbf16, #tpu.memory_space<vmem>>, vector<32x128xbf16>
    %cst_9 = arith.constant 0.000000e+00 : f32
    %13 = vector.broadcast %cst_9 : f32 to vector<2x32xf32>
    %14 = vector.extract_strided_slice %10 {offsets = [0, 0], sizes = [2, 128], strides = [1, 1]} : vector<16x128xf32> to vector<2x128xf32>
    %15 = arith.truncf %13 : vector<2x32xf32> to vector<2x32xbf16>
    %cst_10 = arith.constant dense<0.000000e+00> : vector<2x128xf32>
    %16 = tpu.matmul %15, %11, %cst_10 {dimension_numbers = #tpu.dot_dimension_numbers<[1], [0], [0], [1], [0, 0, 1, 1], [], []>} : vector<2x32xbf16>, vector<32x128xbf16>, vector<2x128xf32> -> vector<2x128xf32>
    %17 = arith.addf %14, %16 : vector<2x128xf32>
    %18 = arith.negf %17 : vector<2x128xf32>
    %19 = math.exp %18 : vector<2x128xf32>
    %cst_11 = arith.constant 1.000000e+00 : f32
    %20 = vector.broadcast %cst_11 : f32 to vector<2x128xf32>
    %21 = arith.addf %20, %19 : vector<2x128xf32>
    %22 = arith.divf %20, %21 : vector<2x128xf32>
    %23 = vector.extract_strided_slice %22 {offsets = [0, 0], sizes = [2, 32], strides = [1, 1]} : vector<2x128xf32> to vector<2x32xf32>
    %24 = vector.extract_strided_slice %22 {offsets = [0, 32], sizes = [2, 32], strides = [1, 1]} : vector<2x128xf32> to vector<2x32xf32>
    %25 = vector.extract_strided_slice %22 {offsets = [0, 96], sizes = [2, 32], strides = [1, 1]} : vector<2x128xf32> to vector<2x32xf32>
    %26 = vector.extract_strided_slice %17 {offsets = [0, 64], sizes = [2, 32], strides = [1, 1]} : vector<2x128xf32> to vector<2x32xf32>
    %27 = math.tanh %26 : vector<2x32xf32>
    %28 = arith.mulf %24, %13 : vector<2x32xf32>
    %29 = arith.mulf %23, %27 : vector<2x32xf32>
    %30 = arith.addf %28, %29 : vector<2x32xf32>
    %31 = math.tanh %30 : vector<2x32xf32>
    %32 = arith.mulf %25, %31 : vector<2x32xf32>
    %33 = vector.extract_strided_slice %10 {offsets = [2, 0], sizes = [2, 128], strides = [1, 1]} : vector<16x128xf32> to vector<2x128xf32>
    %34 = arith.truncf %32 : vector<2x32xf32> to vector<2x32xbf16>
    %cst_12 = arith.constant dense<0.000000e+00> : vector<2x128xf32>
    %35 = tpu.matmul %34, %11, %cst_12 {dimension_numbers = #tpu.dot_dimension_numbers<[1], [0], [0], [1], [0, 0, 1, 1], [], []>} : vector<2x32xbf16>, vector<32x128xbf16>, vector<2x128xf32> -> vector<2x128xf32>
    %36 = arith.addf %33, %35 : vector<2x128xf32>
    %37 = arith.negf %36 : vector<2x128xf32>
    %38 = math.exp %37 : vector<2x128xf32>
    %cst_13 = arith.constant 1.000000e+00 : f32
    %39 = vector.broadcast %cst_13 : f32 to vector<2x128xf32>
    %40 = arith.addf %39, %38 : vector<2x128xf32>
    %41 = arith.divf %39, %40 : vector<2x128xf32>
    %42 = vector.extract_strided_slice %41 {offsets = [0, 0], sizes = [2, 32], strides = [1, 1]} : vector<2x128xf32> to vector<2x32xf32>
    %43 = vector.extract_strided_slice %41 {offsets = [0, 32], sizes = [2, 32], strides = [1, 1]} : vector<2x128xf32> to vector<2x32xf32>
    %44 = vector.extract_strided_slice %41 {offsets = [0, 96], sizes = [2, 32], strides = [1, 1]} : vector<2x128xf32> to vector<2x32xf32>
    %45 = vector.extract_strided_slice %36 {offsets = [0, 64], sizes = [2, 32], strides = [1, 1]} : vector<2x128xf32> to vector<2x32xf32>
    %46 = math.tanh %45 : vector<2x32xf32>
    %47 = arith.mulf %43, %30 : vector<2x32xf32>
    %48 = arith.mulf %42, %46 : vector<2x32xf32>
    %49 = arith.addf %47, %48 : vector<2x32xf32>
    %50 = math.tanh %49 : vector<2x32xf32>
    %51 = arith.mulf %44, %50 : vector<2x32xf32>
    %52 = vector.extract_strided_slice %10 {offsets = [4, 0], sizes = [2, 128], strides = [1, 1]} : vector<16x128xf32> to vector<2x128xf32>
    %53 = arith.truncf %51 : vector<2x32xf32> to vector<2x32xbf16>
    %cst_14 = arith.constant dense<0.000000e+00> : vector<2x128xf32>
    %54 = tpu.matmul %53, %11, %cst_14 {dimension_numbers = #tpu.dot_dimension_numbers<[1], [0], [0], [1], [0, 0, 1, 1], [], []>} : vector<2x32xbf16>, vector<32x128xbf16>, vector<2x128xf32> -> vector<2x128xf32>
    %55 = arith.addf %52, %54 : vector<2x128xf32>
    %56 = arith.negf %55 : vector<2x128xf32>
    %57 = math.exp %56 : vector<2x128xf32>
    %cst_15 = arith.constant 1.000000e+00 : f32
    %58 = vector.broadcast %cst_15 : f32 to vector<2x128xf32>
    %59 = arith.addf %58, %57 : vector<2x128xf32>
    %60 = arith.divf %58, %59 : vector<2x128xf32>
    %61 = vector.extract_strided_slice %60 {offsets = [0, 0], sizes = [2, 32], strides = [1, 1]} : vector<2x128xf32> to vector<2x32xf32>
    %62 = vector.extract_strided_slice %60 {offsets = [0, 32], sizes = [2, 32], strides = [1, 1]} : vector<2x128xf32> to vector<2x32xf32>
    %63 = vector.extract_strided_slice %60 {offsets = [0, 96], sizes = [2, 32], strides = [1, 1]} : vector<2x128xf32> to vector<2x32xf32>
    %64 = vector.extract_strided_slice %55 {offsets = [0, 64], sizes = [2, 32], strides = [1, 1]} : vector<2x128xf32> to vector<2x32xf32>
    %65 = math.tanh %64 : vector<2x32xf32>
    %66 = arith.mulf %62, %49 : vector<2x32xf32>
    %67 = arith.mulf %61, %65 : vector<2x32xf32>
    %68 = arith.addf %66, %67 : vector<2x32xf32>
    %69 = math.tanh %68 : vector<2x32xf32>
    %70 = arith.mulf %63, %69 : vector<2x32xf32>
    %71 = vector.extract_strided_slice %10 {offsets = [6, 0], sizes = [2, 128], strides = [1, 1]} : vector<16x128xf32> to vector<2x128xf32>
    %72 = arith.truncf %70 : vector<2x32xf32> to vector<2x32xbf16>
    %cst_16 = arith.constant dense<0.000000e+00> : vector<2x128xf32>
    %73 = tpu.matmul %72, %11, %cst_16 {dimension_numbers = #tpu.dot_dimension_numbers<[1], [0], [0], [1], [0, 0, 1, 1], [], []>} : vector<2x32xbf16>, vector<32x128xbf16>, vector<2x128xf32> -> vector<2x128xf32>
    %74 = arith.addf %71, %73 : vector<2x128xf32>
    %75 = arith.negf %74 : vector<2x128xf32>
    %76 = math.exp %75 : vector<2x128xf32>
    %cst_17 = arith.constant 1.000000e+00 : f32
    %77 = vector.broadcast %cst_17 : f32 to vector<2x128xf32>
    %78 = arith.addf %77, %76 : vector<2x128xf32>
    %79 = arith.divf %77, %78 : vector<2x128xf32>
    %80 = vector.extract_strided_slice %79 {offsets = [0, 0], sizes = [2, 32], strides = [1, 1]} : vector<2x128xf32> to vector<2x32xf32>
    %81 = vector.extract_strided_slice %79 {offsets = [0, 32], sizes = [2, 32], strides = [1, 1]} : vector<2x128xf32> to vector<2x32xf32>
    %82 = vector.extract_strided_slice %79 {offsets = [0, 96], sizes = [2, 32], strides = [1, 1]} : vector<2x128xf32> to vector<2x32xf32>
    %83 = vector.extract_strided_slice %74 {offsets = [0, 64], sizes = [2, 32], strides = [1, 1]} : vector<2x128xf32> to vector<2x32xf32>
    %84 = math.tanh %83 : vector<2x32xf32>
    %85 = arith.mulf %81, %68 : vector<2x32xf32>
    %86 = arith.mulf %80, %84 : vector<2x32xf32>
    %87 = arith.addf %85, %86 : vector<2x32xf32>
    %88 = math.tanh %87 : vector<2x32xf32>
    %89 = arith.mulf %82, %88 : vector<2x32xf32>
    %90 = vector.extract_strided_slice %10 {offsets = [8, 0], sizes = [2, 128], strides = [1, 1]} : vector<16x128xf32> to vector<2x128xf32>
    %91 = arith.truncf %89 : vector<2x32xf32> to vector<2x32xbf16>
    %cst_18 = arith.constant dense<0.000000e+00> : vector<2x128xf32>
    %92 = tpu.matmul %91, %11, %cst_18 {dimension_numbers = #tpu.dot_dimension_numbers<[1], [0], [0], [1], [0, 0, 1, 1], [], []>} : vector<2x32xbf16>, vector<32x128xbf16>, vector<2x128xf32> -> vector<2x128xf32>
    %93 = arith.addf %90, %92 : vector<2x128xf32>
    %94 = arith.negf %93 : vector<2x128xf32>
    %95 = math.exp %94 : vector<2x128xf32>
    %cst_19 = arith.constant 1.000000e+00 : f32
    %96 = vector.broadcast %cst_19 : f32 to vector<2x128xf32>
    %97 = arith.addf %96, %95 : vector<2x128xf32>
    %98 = arith.divf %96, %97 : vector<2x128xf32>
    %99 = vector.extract_strided_slice %98 {offsets = [0, 0], sizes = [2, 32], strides = [1, 1]} : vector<2x128xf32> to vector<2x32xf32>
    %100 = vector.extract_strided_slice %98 {offsets = [0, 32], sizes = [2, 32], strides = [1, 1]} : vector<2x128xf32> to vector<2x32xf32>
    %101 = vector.extract_strided_slice %98 {offsets = [0, 96], sizes = [2, 32], strides = [1, 1]} : vector<2x128xf32> to vector<2x32xf32>
    %102 = vector.extract_strided_slice %93 {offsets = [0, 64], sizes = [2, 32], strides = [1, 1]} : vector<2x128xf32> to vector<2x32xf32>
    %103 = math.tanh %102 : vector<2x32xf32>
    %104 = arith.mulf %100, %87 : vector<2x32xf32>
    %105 = arith.mulf %99, %103 : vector<2x32xf32>
    %106 = arith.addf %104, %105 : vector<2x32xf32>
    %107 = math.tanh %106 : vector<2x32xf32>
    %108 = arith.mulf %101, %107 : vector<2x32xf32>
    %109 = vector.extract_strided_slice %10 {offsets = [10, 0], sizes = [2, 128], strides = [1, 1]} : vector<16x128xf32> to vector<2x128xf32>
    %110 = arith.truncf %108 : vector<2x32xf32> to vector<2x32xbf16>
    %cst_20 = arith.constant dense<0.000000e+00> : vector<2x128xf32>
    %111 = tpu.matmul %110, %11, %cst_20 {dimension_numbers = #tpu.dot_dimension_numbers<[1], [0], [0], [1], [0, 0, 1, 1], [], []>} : vector<2x32xbf16>, vector<32x128xbf16>, vector<2x128xf32> -> vector<2x128xf32>
    %112 = arith.addf %109, %111 : vector<2x128xf32>
    %113 = arith.negf %112 : vector<2x128xf32>
    %114 = math.exp %113 : vector<2x128xf32>
    %cst_21 = arith.constant 1.000000e+00 : f32
    %115 = vector.broadcast %cst_21 : f32 to vector<2x128xf32>
    %116 = arith.addf %115, %114 : vector<2x128xf32>
    %117 = arith.divf %115, %116 : vector<2x128xf32>
    %118 = vector.extract_strided_slice %117 {offsets = [0, 0], sizes = [2, 32], strides = [1, 1]} : vector<2x128xf32> to vector<2x32xf32>
    %119 = vector.extract_strided_slice %117 {offsets = [0, 32], sizes = [2, 32], strides = [1, 1]} : vector<2x128xf32> to vector<2x32xf32>
    %120 = vector.extract_strided_slice %117 {offsets = [0, 96], sizes = [2, 32], strides = [1, 1]} : vector<2x128xf32> to vector<2x32xf32>
    %121 = vector.extract_strided_slice %112 {offsets = [0, 64], sizes = [2, 32], strides = [1, 1]} : vector<2x128xf32> to vector<2x32xf32>
    %122 = math.tanh %121 : vector<2x32xf32>
    %123 = arith.mulf %119, %106 : vector<2x32xf32>
    %124 = arith.mulf %118, %122 : vector<2x32xf32>
    %125 = arith.addf %123, %124 : vector<2x32xf32>
    %126 = math.tanh %125 : vector<2x32xf32>
    %127 = arith.mulf %120, %126 : vector<2x32xf32>
    %128 = vector.extract_strided_slice %10 {offsets = [12, 0], sizes = [2, 128], strides = [1, 1]} : vector<16x128xf32> to vector<2x128xf32>
    %129 = arith.truncf %127 : vector<2x32xf32> to vector<2x32xbf16>
    %cst_22 = arith.constant dense<0.000000e+00> : vector<2x128xf32>
    %130 = tpu.matmul %129, %11, %cst_22 {dimension_numbers = #tpu.dot_dimension_numbers<[1], [0], [0], [1], [0, 0, 1, 1], [], []>} : vector<2x32xbf16>, vector<32x128xbf16>, vector<2x128xf32> -> vector<2x128xf32>
    %131 = arith.addf %128, %130 : vector<2x128xf32>
    %132 = arith.negf %131 : vector<2x128xf32>
    %133 = math.exp %132 : vector<2x128xf32>
    %cst_23 = arith.constant 1.000000e+00 : f32
    %134 = vector.broadcast %cst_23 : f32 to vector<2x128xf32>
    %135 = arith.addf %134, %133 : vector<2x128xf32>
    %136 = arith.divf %134, %135 : vector<2x128xf32>
    %137 = vector.extract_strided_slice %136 {offsets = [0, 0], sizes = [2, 32], strides = [1, 1]} : vector<2x128xf32> to vector<2x32xf32>
    %138 = vector.extract_strided_slice %136 {offsets = [0, 32], sizes = [2, 32], strides = [1, 1]} : vector<2x128xf32> to vector<2x32xf32>
    %139 = vector.extract_strided_slice %136 {offsets = [0, 96], sizes = [2, 32], strides = [1, 1]} : vector<2x128xf32> to vector<2x32xf32>
    %140 = vector.extract_strided_slice %131 {offsets = [0, 64], sizes = [2, 32], strides = [1, 1]} : vector<2x128xf32> to vector<2x32xf32>
    %141 = math.tanh %140 : vector<2x32xf32>
    %142 = arith.mulf %138, %125 : vector<2x32xf32>
    %143 = arith.mulf %137, %141 : vector<2x32xf32>
    %144 = arith.addf %142, %143 : vector<2x32xf32>
    %145 = math.tanh %144 : vector<2x32xf32>
    %146 = arith.mulf %139, %145 : vector<2x32xf32>
    %147 = vector.extract_strided_slice %10 {offsets = [14, 0], sizes = [2, 128], strides = [1, 1]} : vector<16x128xf32> to vector<2x128xf32>
    %148 = arith.truncf %146 : vector<2x32xf32> to vector<2x32xbf16>
    %cst_24 = arith.constant dense<0.000000e+00> : vector<2x128xf32>
    %149 = tpu.matmul %148, %11, %cst_24 {dimension_numbers = #tpu.dot_dimension_numbers<[1], [0], [0], [1], [0, 0, 1, 1], [], []>} : vector<2x32xbf16>, vector<32x128xbf16>, vector<2x128xf32> -> vector<2x128xf32>
    %150 = arith.addf %147, %149 : vector<2x128xf32>
    %151 = arith.negf %150 : vector<2x128xf32>
    %152 = math.exp %151 : vector<2x128xf32>
    %cst_25 = arith.constant 1.000000e+00 : f32
    %153 = vector.broadcast %cst_25 : f32 to vector<2x128xf32>
    %154 = arith.addf %153, %152 : vector<2x128xf32>
    %155 = arith.divf %153, %154 : vector<2x128xf32>
    %156 = vector.extract_strided_slice %155 {offsets = [0, 0], sizes = [2, 32], strides = [1, 1]} : vector<2x128xf32> to vector<2x32xf32>
    %157 = vector.extract_strided_slice %155 {offsets = [0, 32], sizes = [2, 32], strides = [1, 1]} : vector<2x128xf32> to vector<2x32xf32>
    %158 = vector.extract_strided_slice %155 {offsets = [0, 96], sizes = [2, 32], strides = [1, 1]} : vector<2x128xf32> to vector<2x32xf32>
    %159 = vector.extract_strided_slice %150 {offsets = [0, 64], sizes = [2, 32], strides = [1, 1]} : vector<2x128xf32> to vector<2x32xf32>
    %160 = math.tanh %159 : vector<2x32xf32>
    %161 = arith.mulf %157, %144 : vector<2x32xf32>
    %162 = arith.mulf %156, %160 : vector<2x32xf32>
    %163 = arith.addf %161, %162 : vector<2x32xf32>
    %164 = math.tanh %163 : vector<2x32xf32>
    %165 = arith.mulf %158, %164 : vector<2x32xf32>
    %166 = tpu.concatenate %32, %51, %70, %89, %108, %127, %146, %165 in 0 : vector<2x32xf32>, vector<2x32xf32>, vector<2x32xf32>, vector<2x32xf32>, vector<2x32xf32>, vector<2x32xf32>, vector<2x32xf32>, vector<2x32xf32> -> vector<16x32xf32>
    %c0_26 = arith.constant 0 : index
    %c0_27 = arith.constant 0 : index
    %167 = vector.load %arg4[%c0_26, %c0_27] : memref<32x128xf32, #tpu.memory_space<vmem>>, vector<32x128xf32>
    %cst_28 = arith.constant dense<0.000000e+00> : vector<16x128xf32>
    %168 = tpu.matmul %166, %167, %cst_28 {dimension_numbers = #tpu.dot_dimension_numbers<[1], [0], [0], [1], [0, 0, 1, 1], [], []>} : vector<16x32xf32>, vector<32x128xf32>, vector<16x128xf32> -> vector<16x128xf32>
    %c0_29 = arith.constant 0 : index
    %c0_30 = arith.constant 0 : index
    %169 = vector.load %arg5[%c0_29, %c0_30] : memref<1x128xf32, #tpu.memory_space<vmem>>, vector<1x128xf32>
    %170 = vector.broadcast %169 : vector<1x128xf32> to vector<16x128xf32>
    %171 = arith.addf %168, %170 : vector<16x128xf32>
    %172 = vector.extract_strided_slice %171 {offsets = [0, 0], sizes = [2, 128], strides = [1, 1]} : vector<16x128xf32> to vector<2x128xf32>
    %173 = arith.truncf %13 : vector<2x32xf32> to vector<2x32xbf16>
    %cst_31 = arith.constant dense<0.000000e+00> : vector<2x128xf32>
    %174 = tpu.matmul %173, %12, %cst_31 {dimension_numbers = #tpu.dot_dimension_numbers<[1], [0], [0], [1], [0, 0, 1, 1], [], []>} : vector<2x32xbf16>, vector<32x128xbf16>, vector<2x128xf32> -> vector<2x128xf32>
    %175 = arith.addf %172, %174 : vector<2x128xf32>
    %176 = arith.negf %175 : vector<2x128xf32>
    %177 = math.exp %176 : vector<2x128xf32>
    %cst_32 = arith.constant 1.000000e+00 : f32
    %178 = vector.broadcast %cst_32 : f32 to vector<2x128xf32>
    %179 = arith.addf %178, %177 : vector<2x128xf32>
    %180 = arith.divf %178, %179 : vector<2x128xf32>
    %181 = vector.extract_strided_slice %180 {offsets = [0, 0], sizes = [2, 32], strides = [1, 1]} : vector<2x128xf32> to vector<2x32xf32>
    %182 = vector.extract_strided_slice %180 {offsets = [0, 32], sizes = [2, 32], strides = [1, 1]} : vector<2x128xf32> to vector<2x32xf32>
    %183 = vector.extract_strided_slice %180 {offsets = [0, 96], sizes = [2, 32], strides = [1, 1]} : vector<2x128xf32> to vector<2x32xf32>
    %184 = vector.extract_strided_slice %175 {offsets = [0, 64], sizes = [2, 32], strides = [1, 1]} : vector<2x128xf32> to vector<2x32xf32>
    %185 = math.tanh %184 : vector<2x32xf32>
    %186 = arith.mulf %182, %13 : vector<2x32xf32>
    %187 = arith.mulf %181, %185 : vector<2x32xf32>
    %188 = arith.addf %186, %187 : vector<2x32xf32>
    %189 = math.tanh %188 : vector<2x32xf32>
    %190 = arith.mulf %183, %189 : vector<2x32xf32>
    %191 = vector.extract_strided_slice %171 {offsets = [2, 0], sizes = [2, 128], strides = [1, 1]} : vector<16x128xf32> to vector<2x128xf32>
    %192 = arith.truncf %190 : vector<2x32xf32> to vector<2x32xbf16>
    %cst_33 = arith.constant dense<0.000000e+00> : vector<2x128xf32>
    %193 = tpu.matmul %192, %12, %cst_33 {dimension_numbers = #tpu.dot_dimension_numbers<[1], [0], [0], [1], [0, 0, 1, 1], [], []>} : vector<2x32xbf16>, vector<32x128xbf16>, vector<2x128xf32> -> vector<2x128xf32>
    %194 = arith.addf %191, %193 : vector<2x128xf32>
    %195 = arith.negf %194 : vector<2x128xf32>
    %196 = math.exp %195 : vector<2x128xf32>
    %cst_34 = arith.constant 1.000000e+00 : f32
    %197 = vector.broadcast %cst_34 : f32 to vector<2x128xf32>
    %198 = arith.addf %197, %196 : vector<2x128xf32>
    %199 = arith.divf %197, %198 : vector<2x128xf32>
    %200 = vector.extract_strided_slice %199 {offsets = [0, 0], sizes = [2, 32], strides = [1, 1]} : vector<2x128xf32> to vector<2x32xf32>
    %201 = vector.extract_strided_slice %199 {offsets = [0, 32], sizes = [2, 32], strides = [1, 1]} : vector<2x128xf32> to vector<2x32xf32>
    %202 = vector.extract_strided_slice %199 {offsets = [0, 96], sizes = [2, 32], strides = [1, 1]} : vector<2x128xf32> to vector<2x32xf32>
    %203 = vector.extract_strided_slice %194 {offsets = [0, 64], sizes = [2, 32], strides = [1, 1]} : vector<2x128xf32> to vector<2x32xf32>
    %204 = math.tanh %203 : vector<2x32xf32>
    %205 = arith.mulf %201, %188 : vector<2x32xf32>
    %206 = arith.mulf %200, %204 : vector<2x32xf32>
    %207 = arith.addf %205, %206 : vector<2x32xf32>
    %208 = math.tanh %207 : vector<2x32xf32>
    %209 = arith.mulf %202, %208 : vector<2x32xf32>
    %210 = vector.extract_strided_slice %171 {offsets = [4, 0], sizes = [2, 128], strides = [1, 1]} : vector<16x128xf32> to vector<2x128xf32>
    %211 = arith.truncf %209 : vector<2x32xf32> to vector<2x32xbf16>
    %cst_35 = arith.constant dense<0.000000e+00> : vector<2x128xf32>
    %212 = tpu.matmul %211, %12, %cst_35 {dimension_numbers = #tpu.dot_dimension_numbers<[1], [0], [0], [1], [0, 0, 1, 1], [], []>} : vector<2x32xbf16>, vector<32x128xbf16>, vector<2x128xf32> -> vector<2x128xf32>
    %213 = arith.addf %210, %212 : vector<2x128xf32>
    %214 = arith.negf %213 : vector<2x128xf32>
    %215 = math.exp %214 : vector<2x128xf32>
    %cst_36 = arith.constant 1.000000e+00 : f32
    %216 = vector.broadcast %cst_36 : f32 to vector<2x128xf32>
    %217 = arith.addf %216, %215 : vector<2x128xf32>
    %218 = arith.divf %216, %217 : vector<2x128xf32>
    %219 = vector.extract_strided_slice %218 {offsets = [0, 0], sizes = [2, 32], strides = [1, 1]} : vector<2x128xf32> to vector<2x32xf32>
    %220 = vector.extract_strided_slice %218 {offsets = [0, 32], sizes = [2, 32], strides = [1, 1]} : vector<2x128xf32> to vector<2x32xf32>
    %221 = vector.extract_strided_slice %218 {offsets = [0, 96], sizes = [2, 32], strides = [1, 1]} : vector<2x128xf32> to vector<2x32xf32>
    %222 = vector.extract_strided_slice %213 {offsets = [0, 64], sizes = [2, 32], strides = [1, 1]} : vector<2x128xf32> to vector<2x32xf32>
    %223 = math.tanh %222 : vector<2x32xf32>
    %224 = arith.mulf %220, %207 : vector<2x32xf32>
    %225 = arith.mulf %219, %223 : vector<2x32xf32>
    %226 = arith.addf %224, %225 : vector<2x32xf32>
    %227 = math.tanh %226 : vector<2x32xf32>
    %228 = arith.mulf %221, %227 : vector<2x32xf32>
    %229 = vector.extract_strided_slice %171 {offsets = [6, 0], sizes = [2, 128], strides = [1, 1]} : vector<16x128xf32> to vector<2x128xf32>
    %230 = arith.truncf %228 : vector<2x32xf32> to vector<2x32xbf16>
    %cst_37 = arith.constant dense<0.000000e+00> : vector<2x128xf32>
    %231 = tpu.matmul %230, %12, %cst_37 {dimension_numbers = #tpu.dot_dimension_numbers<[1], [0], [0], [1], [0, 0, 1, 1], [], []>} : vector<2x32xbf16>, vector<32x128xbf16>, vector<2x128xf32> -> vector<2x128xf32>
    %232 = arith.addf %229, %231 : vector<2x128xf32>
    %233 = arith.negf %232 : vector<2x128xf32>
    %234 = math.exp %233 : vector<2x128xf32>
    %cst_38 = arith.constant 1.000000e+00 : f32
    %235 = vector.broadcast %cst_38 : f32 to vector<2x128xf32>
    %236 = arith.addf %235, %234 : vector<2x128xf32>
    %237 = arith.divf %235, %236 : vector<2x128xf32>
    %238 = vector.extract_strided_slice %237 {offsets = [0, 0], sizes = [2, 32], strides = [1, 1]} : vector<2x128xf32> to vector<2x32xf32>
    %239 = vector.extract_strided_slice %237 {offsets = [0, 32], sizes = [2, 32], strides = [1, 1]} : vector<2x128xf32> to vector<2x32xf32>
    %240 = vector.extract_strided_slice %237 {offsets = [0, 96], sizes = [2, 32], strides = [1, 1]} : vector<2x128xf32> to vector<2x32xf32>
    %241 = vector.extract_strided_slice %232 {offsets = [0, 64], sizes = [2, 32], strides = [1, 1]} : vector<2x128xf32> to vector<2x32xf32>
    %242 = math.tanh %241 : vector<2x32xf32>
    %243 = arith.mulf %239, %226 : vector<2x32xf32>
    %244 = arith.mulf %238, %242 : vector<2x32xf32>
    %245 = arith.addf %243, %244 : vector<2x32xf32>
    %246 = math.tanh %245 : vector<2x32xf32>
    %247 = arith.mulf %240, %246 : vector<2x32xf32>
    %248 = vector.extract_strided_slice %171 {offsets = [8, 0], sizes = [2, 128], strides = [1, 1]} : vector<16x128xf32> to vector<2x128xf32>
    %249 = arith.truncf %247 : vector<2x32xf32> to vector<2x32xbf16>
    %cst_39 = arith.constant dense<0.000000e+00> : vector<2x128xf32>
    %250 = tpu.matmul %249, %12, %cst_39 {dimension_numbers = #tpu.dot_dimension_numbers<[1], [0], [0], [1], [0, 0, 1, 1], [], []>} : vector<2x32xbf16>, vector<32x128xbf16>, vector<2x128xf32> -> vector<2x128xf32>
    %251 = arith.addf %248, %250 : vector<2x128xf32>
    %252 = arith.negf %251 : vector<2x128xf32>
    %253 = math.exp %252 : vector<2x128xf32>
    %cst_40 = arith.constant 1.000000e+00 : f32
    %254 = vector.broadcast %cst_40 : f32 to vector<2x128xf32>
    %255 = arith.addf %254, %253 : vector<2x128xf32>
    %256 = arith.divf %254, %255 : vector<2x128xf32>
    %257 = vector.extract_strided_slice %256 {offsets = [0, 0], sizes = [2, 32], strides = [1, 1]} : vector<2x128xf32> to vector<2x32xf32>
    %258 = vector.extract_strided_slice %256 {offsets = [0, 32], sizes = [2, 32], strides = [1, 1]} : vector<2x128xf32> to vector<2x32xf32>
    %259 = vector.extract_strided_slice %256 {offsets = [0, 96], sizes = [2, 32], strides = [1, 1]} : vector<2x128xf32> to vector<2x32xf32>
    %260 = vector.extract_strided_slice %251 {offsets = [0, 64], sizes = [2, 32], strides = [1, 1]} : vector<2x128xf32> to vector<2x32xf32>
    %261 = math.tanh %260 : vector<2x32xf32>
    %262 = arith.mulf %258, %245 : vector<2x32xf32>
    %263 = arith.mulf %257, %261 : vector<2x32xf32>
    %264 = arith.addf %262, %263 : vector<2x32xf32>
    %265 = math.tanh %264 : vector<2x32xf32>
    %266 = arith.mulf %259, %265 : vector<2x32xf32>
    %267 = vector.extract_strided_slice %171 {offsets = [10, 0], sizes = [2, 128], strides = [1, 1]} : vector<16x128xf32> to vector<2x128xf32>
    %268 = arith.truncf %266 : vector<2x32xf32> to vector<2x32xbf16>
    %cst_41 = arith.constant dense<0.000000e+00> : vector<2x128xf32>
    %269 = tpu.matmul %268, %12, %cst_41 {dimension_numbers = #tpu.dot_dimension_numbers<[1], [0], [0], [1], [0, 0, 1, 1], [], []>} : vector<2x32xbf16>, vector<32x128xbf16>, vector<2x128xf32> -> vector<2x128xf32>
    %270 = arith.addf %267, %269 : vector<2x128xf32>
    %271 = arith.negf %270 : vector<2x128xf32>
    %272 = math.exp %271 : vector<2x128xf32>
    %cst_42 = arith.constant 1.000000e+00 : f32
    %273 = vector.broadcast %cst_42 : f32 to vector<2x128xf32>
    %274 = arith.addf %273, %272 : vector<2x128xf32>
    %275 = arith.divf %273, %274 : vector<2x128xf32>
    %276 = vector.extract_strided_slice %275 {offsets = [0, 0], sizes = [2, 32], strides = [1, 1]} : vector<2x128xf32> to vector<2x32xf32>
    %277 = vector.extract_strided_slice %275 {offsets = [0, 32], sizes = [2, 32], strides = [1, 1]} : vector<2x128xf32> to vector<2x32xf32>
    %278 = vector.extract_strided_slice %275 {offsets = [0, 96], sizes = [2, 32], strides = [1, 1]} : vector<2x128xf32> to vector<2x32xf32>
    %279 = vector.extract_strided_slice %270 {offsets = [0, 64], sizes = [2, 32], strides = [1, 1]} : vector<2x128xf32> to vector<2x32xf32>
    %280 = math.tanh %279 : vector<2x32xf32>
    %281 = arith.mulf %277, %264 : vector<2x32xf32>
    %282 = arith.mulf %276, %280 : vector<2x32xf32>
    %283 = arith.addf %281, %282 : vector<2x32xf32>
    %284 = math.tanh %283 : vector<2x32xf32>
    %285 = arith.mulf %278, %284 : vector<2x32xf32>
    %286 = vector.extract_strided_slice %171 {offsets = [12, 0], sizes = [2, 128], strides = [1, 1]} : vector<16x128xf32> to vector<2x128xf32>
    %287 = arith.truncf %285 : vector<2x32xf32> to vector<2x32xbf16>
    %cst_43 = arith.constant dense<0.000000e+00> : vector<2x128xf32>
    %288 = tpu.matmul %287, %12, %cst_43 {dimension_numbers = #tpu.dot_dimension_numbers<[1], [0], [0], [1], [0, 0, 1, 1], [], []>} : vector<2x32xbf16>, vector<32x128xbf16>, vector<2x128xf32> -> vector<2x128xf32>
    %289 = arith.addf %286, %288 : vector<2x128xf32>
    %290 = arith.negf %289 : vector<2x128xf32>
    %291 = math.exp %290 : vector<2x128xf32>
    %cst_44 = arith.constant 1.000000e+00 : f32
    %292 = vector.broadcast %cst_44 : f32 to vector<2x128xf32>
    %293 = arith.addf %292, %291 : vector<2x128xf32>
    %294 = arith.divf %292, %293 : vector<2x128xf32>
    %295 = vector.extract_strided_slice %294 {offsets = [0, 0], sizes = [2, 32], strides = [1, 1]} : vector<2x128xf32> to vector<2x32xf32>
    %296 = vector.extract_strided_slice %294 {offsets = [0, 32], sizes = [2, 32], strides = [1, 1]} : vector<2x128xf32> to vector<2x32xf32>
    %297 = vector.extract_strided_slice %294 {offsets = [0, 96], sizes = [2, 32], strides = [1, 1]} : vector<2x128xf32> to vector<2x32xf32>
    %298 = vector.extract_strided_slice %289 {offsets = [0, 64], sizes = [2, 32], strides = [1, 1]} : vector<2x128xf32> to vector<2x32xf32>
    %299 = math.tanh %298 : vector<2x32xf32>
    %300 = arith.mulf %296, %283 : vector<2x32xf32>
    %301 = arith.mulf %295, %299 : vector<2x32xf32>
    %302 = arith.addf %300, %301 : vector<2x32xf32>
    %303 = math.tanh %302 : vector<2x32xf32>
    %304 = arith.mulf %297, %303 : vector<2x32xf32>
    %305 = vector.extract_strided_slice %171 {offsets = [14, 0], sizes = [2, 128], strides = [1, 1]} : vector<16x128xf32> to vector<2x128xf32>
    %306 = arith.truncf %304 : vector<2x32xf32> to vector<2x32xbf16>
    %cst_45 = arith.constant dense<0.000000e+00> : vector<2x128xf32>
    %307 = tpu.matmul %306, %12, %cst_45 {dimension_numbers = #tpu.dot_dimension_numbers<[1], [0], [0], [1], [0, 0, 1, 1], [], []>} : vector<2x32xbf16>, vector<32x128xbf16>, vector<2x128xf32> -> vector<2x128xf32>
    %308 = arith.addf %305, %307 : vector<2x128xf32>
    %309 = arith.negf %308 : vector<2x128xf32>
    %310 = math.exp %309 : vector<2x128xf32>
    %cst_46 = arith.constant 1.000000e+00 : f32
    %311 = vector.broadcast %cst_46 : f32 to vector<2x128xf32>
    %312 = arith.addf %311, %310 : vector<2x128xf32>
    %313 = arith.divf %311, %312 : vector<2x128xf32>
    %314 = vector.extract_strided_slice %313 {offsets = [0, 0], sizes = [2, 32], strides = [1, 1]} : vector<2x128xf32> to vector<2x32xf32>
    %315 = vector.extract_strided_slice %313 {offsets = [0, 32], sizes = [2, 32], strides = [1, 1]} : vector<2x128xf32> to vector<2x32xf32>
    %316 = vector.extract_strided_slice %313 {offsets = [0, 96], sizes = [2, 32], strides = [1, 1]} : vector<2x128xf32> to vector<2x32xf32>
    %317 = vector.extract_strided_slice %308 {offsets = [0, 64], sizes = [2, 32], strides = [1, 1]} : vector<2x128xf32> to vector<2x32xf32>
    %318 = math.tanh %317 : vector<2x32xf32>
    %319 = arith.mulf %315, %302 : vector<2x32xf32>
    %320 = arith.mulf %314, %318 : vector<2x32xf32>
    %321 = arith.addf %319, %320 : vector<2x32xf32>
    %322 = math.tanh %321 : vector<2x32xf32>
    %323 = arith.mulf %316, %322 : vector<2x32xf32>
    %324 = vector.extract_strided_slice %247 {offsets = [1, 0], sizes = [1, 32], strides = [1, 1]} : vector<2x32xf32> to vector<1x32xf32>
    %325 = vector.extract_strided_slice %323 {offsets = [1, 0], sizes = [1, 32], strides = [1, 1]} : vector<2x32xf32> to vector<1x32xf32>
    %326 = tpu.concatenate %324, %325 in 0 : vector<1x32xf32>, vector<1x32xf32> -> vector<2x32xf32>
    %c0_47 = arith.constant 0 : index
    %c0_48 = arith.constant 0 : index
    %327 = vector.load %arg7[%c0_47, %c0_48] : memref<1x32xf32, #tpu.memory_space<vmem>>, vector<1x32xf32>
    %328 = vector.broadcast %327 : vector<1x32xf32> to vector<2x32xf32>
    %329 = arith.mulf %326, %328 : vector<2x32xf32>
    %cst_49 = arith.constant dense<0.000000e+00> : vector<2xf32>
    %330 = vector.multi_reduction <add>, %329, %cst_49 [1] : vector<2x32xf32> to vector<2xf32>
    %331 = vector.shape_cast %330 : vector<2xf32> to vector<2x1xf32>
    %c0_50 = arith.constant 0 : index
    %c0_51 = arith.constant 0 : index
    %332 = vector.load %arg8[%c0_50, %c0_51] : memref<1x1xf32, #tpu.memory_space<vmem>>, vector<1x1xf32>
    %333 = vector.broadcast %332 : vector<1x1xf32> to vector<2x1xf32>
    %334 = arith.addf %331, %333 : vector<2x1xf32>
    %cst_52 = arith.constant 0.000000e+00 : f32
    %335 = vector.broadcast %cst_52 : f32 to vector<2x1xf32>
    %336 = arith.maximumf %334, %335 : vector<2x1xf32>
    %337 = tpu.concatenate %165, %323, %163, %321 in 1 : vector<2x32xf32>, vector<2x32xf32>, vector<2x32xf32>, vector<2x32xf32> -> vector<2x128xf32>
    %338 = vector.shape_cast %336 : vector<2x1xf32> to vector<2x1xf32>
    %339 = vector.broadcast %338 : vector<2x1xf32> to vector<2x128xf32>
    %cst_53 = arith.constant 0.000000e+00 : f32
    %340 = vector.broadcast %cst_53 : f32 to vector<4x128xf32>
    %341 = tpu.concatenate %337, %339, %340 in 0 : vector<2x128xf32>, vector<2x128xf32>, vector<4x128xf32> -> vector<8x128xf32>
    %c0_54 = arith.constant 0 : index
    %c0_55 = arith.constant 0 : index
    %342 = vector.load %arg9[%c0_54, %c0_55] : memref<8x128xf32, #tpu.memory_space<vmem>>, vector<8x128xf32>
    tpu.vector_store %arg9[%c0_54, %c0_55], %341 {strides = array<i32>} : memref<8x128xf32, #tpu.memory_space<vmem>>, vector<8x128xf32>,
    return
  }
}

</mosaic_0001>

<llo_original>
// kernel: lstm_model_forward.1
$region0: #{lstm_model_forward.1}
  #allocation0 [shape = 'u32[]', space=smem, size = 0x4, offset = 0x4, fixed_abs, tag = 'smem constant byte address 0x4 - core index']
  #allocation1 [shape = 'u32[144,128]{1,0:T(1,128)}', space=vmem, size = 0x12000, scoped, tag = 'internal scratch']
  #allocation2 [shape = 'f32[1,1]{1,0:T(1,128)S(1)}', space=vmem, size = 0x200, scoped, tag = 'scoped memory for lstm_model_forward.1']
  %s0 = inlined_call_operand.vmem [shape: s32[16,1], index: 0, kind: input, shape index: {}]
  %s1 = inlined_call_operand.hbm [shape: f32[56,128], index: 1, kind: input, shape index: {}]
  %s2 = inlined_call_operand.hbm [shape: f32[1,128], index: 2, kind: input, shape index: {}]
  %s3 = inlined_call_operand.vmem [shape: bf16[32,128], index: 3, kind: input, shape index: {}]
  %s4 = inlined_call_operand.vmem [shape: f32[32,128], index: 4, kind: input, shape index: {}]
  %s5 = inlined_call_operand.hbm [shape: f32[1,128], index: 5, kind: input, shape index: {}]
  %s6 = inlined_call_operand.vmem [shape: bf16[32,128], index: 6, kind: input, shape index: {}]
  %s7 = inlined_call_operand.hbm [shape: f32[1,32], index: 7, kind: input, shape index: {}]
  %s8 = inlined_call_operand.<no memory space> [shape: f32[1,1], index: 8, kind: input, shape index: {}]
  %s9 = inlined_call_operand.vmem [shape: f32[8,128], index: 9, kind: output, shape index: {}]
  %s10 = sld [smem:[#allocation0]]
  $region62: #{lstm_model_forward.1} parent=0
    _
  %s12 = ssub.s32 1, %s10
  %s13 = scalar_select 0, %s12, %s10
  %v14 = vstv %s8
  %15 = vst [vmem:[#allocation2] sm:$0x1] %v14
  $region1: #{lstm_model_forward.1} parent=0
    #allocation3 [shape = 'u8[28672]{0}', space=vmem, size = 0x7000, scoped, tag = 'input window, operand 1, single buffered']
    #allocation4 [shape = 's32[1]{0}', space=sflag, size = 0x4, scoped, tag = 'scoped memory for lstm_model_forward.1']
    #allocation5 [shape = 'u8[512]{0}', space=vmem, size = 0x400, scoped, tag = 'input window, operand 2, single buffered']
    #allocation6 [shape = 's32[1]{0}', space=sflag, size = 0x4, scoped, tag = 'scoped memory for lstm_model_forward.1']
    #allocation7 [shape = 'u8[512]{0}', space=vmem, size = 0x400, scoped, tag = 'input window, operand 5, single buffered']
    #allocation8 [shape = 'u8[512]{0}', space=vmem, size = 0x400, scoped, tag = 'input window, operand 7, single buffered']
    #allocation9 [shape = 's32[1]{0}', space=sflag, size = 0x4, scoped, tag = 'scoped memory for lstm_model_forward.1']
    %16 = vsyncpa [#allocation4], 0
    %17 = vsyncpa [#allocation6], 0
    %18 = vsyncpa [#allocation9], 0
    // Predicated region
    $region2: #{lstm_model_forward.1} parent=1 // pred_check
      _
    $region3: #{lstm_model_forward.1} parent=1 // pred_check_branch
      %20 = sbr.rel (0) target = $region5
    $region4: #{lstm_model_forward.1} parent=1 // pred_region
      _
    $region5: #{lstm_model_forward.1} parent=1 // pred_fallthru
      _
    // Predicated region
    $region6: #{lstm_model_forward.1} parent=1 // pred_check
      _
    $region7: #{lstm_model_forward.1} parent=1 // pred_check_branch
      %22 = sbr.rel (0) target = $region9
    $region8: #{lstm_model_forward.1} parent=1 // pred_region
      %s24 = ssub.s32 896, 896
      %25 = vsyncadd [#allocation4], %s24
      %s26 = sshll.u32 [#allocation3], 4
      %s27 = int_to_ptr.vmem [resolvable:$true] %s26
      %32 = dma.hbm_to_vmem [thread:$0]  %s1, 896, %s27, [#allocation4], 128, 128, 8
    $region9: #{lstm_model_forward.1} parent=1 // pred_fallthru
      _
    // Predicated region
    $region10: #{lstm_model_forward.1} parent=1 // pred_check
      _
    $region11: #{lstm_model_forward.1} parent=1 // pred_check_branch
      %34 = sbr.rel (0) target = $region13
    $region12: #{lstm_model_forward.1} parent=1 // pred_region
      %s36 = ssub.s32 16, 16
      %37 = vsyncadd [#allocation6], %s36
      %s39 = sshll.u32 [#allocation5], 4
      %s40 = int_to_ptr.vmem [resolvable:$true] %s39
      %42 = dma.hbm_to_vmem [thread:$0]  %s2, 16, %s40, [#allocation6]
    $region13: #{lstm_model_forward.1} parent=1 // pred_fallthru
      _
    // Predicated region
    $region14: #{lstm_model_forward.1} parent=1 // pred_check
      _
    $region15: #{lstm_model_forward.1} parent=1 // pred_check_branch
      %44 = sbr.rel (0) target = $region17
    $region16: #{lstm_model_forward.1} parent=1 // pred_region
      _
    $region17: #{lstm_model_forward.1} parent=1 // pred_fallthru
      _
    // Predicated region
    $region18: #{lstm_model_forward.1} parent=1 // pred_check
      _
    $region19: #{lstm_model_forward.1} parent=1 // pred_check_branch
      %46 = sbr.rel (0) target = $region21
    $region20: #{lstm_model_forward.1} parent=1 // pred_region
      _
    $region21: #{lstm_model_forward.1} parent=1 // pred_fallthru
      _
    // Predicated region
    $region22: #{lstm_model_forward.1} parent=1 // pred_check
      _
    $region23: #{lstm_model_forward.1} parent=1 // pred_check_branch
      %48 = sbr.rel (0) target = $region25
    $region24: #{lstm_model_forward.1} parent=1 // pred_region
      %s50 = ssub.s32 16, 16
      %51 = vsyncadd [#allocation6], %s50
      %s53 = sshll.u32 [#allocation7], 4
      %s54 = int_to_ptr.vmem [resolvable:$true] %s53
      %56 = dma.hbm_to_vmem [thread:$0]  %s5, 16, %s54, [#allocation6]
    $region25: #{lstm_model_forward.1} parent=1 // pred_fallthru
      _
    // Predicated region
    $region26: #{lstm_model_forward.1} parent=1 // pred_check
      _
    $region27: #{lstm_model_forward.1} parent=1 // pred_check_branch
      %58 = sbr.rel (0) target = $region29
    $region28: #{lstm_model_forward.1} parent=1 // pred_region
      _
    $region29: #{lstm_model_forward.1} parent=1 // pred_fallthru
      _
    // Predicated region
    $region30: #{lstm_model_forward.1} parent=1 // pred_check
      _
    $region31: #{lstm_model_forward.1} parent=1 // pred_check_branch
      %60 = sbr.rel (0) target = $region33
    $region32: #{lstm_model_forward.1} parent=1 // pred_region
      %s62 = ssub.s32 16, 16
      %63 = vsyncadd [#allocation9], %s62
      %s65 = sshll.u32 [#allocation8], 4
      %s66 = int_to_ptr.vmem [resolvable:$true] %s65
      %68 = dma.hbm_to_vmem [thread:$0]  %s7, 16, %s66, [#allocation9]
    $region33: #{lstm_model_forward.1} parent=1 // pred_fallthru
      _
    // Predicated region
    $region34: #{lstm_model_forward.1} parent=1 // pred_check
      _
    $region35: #{lstm_model_forward.1} parent=1 // pred_check_branch
      %70 = sbr.rel (0) target = $region37
    $region36: #{lstm_model_forward.1} parent=1 // pred_region
      _
    $region37: #{lstm_model_forward.1} parent=1 // pred_fallthru
      _
    // Predicated region
    $region38: #{lstm_model_forward.1} parent=1 // pred_check
      _
    $region39: #{lstm_model_forward.1} parent=1 // pred_check_branch
      %72 = sbr.rel (0) target = $region41
    $region40: #{lstm_model_forward.1} parent=1 // pred_region
      %73 = dma.done [#allocation4], 896
    $region41: #{lstm_model_forward.1} parent=1 // pred_fallthru
      _
    // Predicated region
    $region42: #{lstm_model_forward.1} parent=1 // pred_check
      _
    $region43: #{lstm_model_forward.1} parent=1 // pred_check_branch
      %75 = sbr.rel (0) target = $region45
    $region44: #{lstm_model_forward.1} parent=1 // pred_region
      %76 = dma.done [#allocation6], 16
    $region45: #{lstm_model_forward.1} parent=1 // pred_fallthru
      _
    // Predicated region
    $region46: #{lstm_model_forward.1} parent=1 // pred_check
      _
    $region47: #{lstm_model_forward.1} parent=1 // pred_check_branch
      %78 = sbr.rel (0) target = $region49
    $region48: #{lstm_model_forward.1} parent=1 // pred_region
      %79 = dma.done [#allocation6], 16
    $region49: #{lstm_model_forward.1} parent=1 // pred_fallthru
      _
    // Predicated region
    $region50: #{lstm_model_forward.1} parent=1 // pred_check
      _
    $region51: #{lstm_model_forward.1} parent=1 // pred_check_branch
      %81 = sbr.rel (0) target = $region53
    $region52: #{lstm_model_forward.1} parent=1 // pred_region
      %82 = dma.done [#allocation9], 16
    $region53: #{lstm_model_forward.1} parent=1 // pred_fallthru
      _
    %v84 = vld [vmem:[%s0] sm:$0xff]
    %v85 = vld [vmem:[%s0 + $0x8] sm:$0xff]
    %v86 = vlaneseq
    %v87 = vand.u32 %v86, 127
    %88 = vset.pattern.permute.xlu0 0
    %89 = vperm.xlu0 %88, %v84
    %v90 = vpop.permute.xlu0 %89
    %91 = vset.pattern.permute.xlu0 0
    %92 = vperm.xlu0 %91, %v85
    %v93 = vpop.permute.xlu0 %92
    %vm94 = vcmp.eq.s32.totalorder %v90, %v87
    %vm95 = vcmp.eq.s32.totalorder %v93, %v87
    %v96 = vsel %vm94, 1, 0
    %v97 = vsel %vm95, 1, 0
    %v98 = vcvt.s32.f32 %v96
    %v99 = vcvt.s32.f32 %v97
    %v100 = vld [vmem:[#allocation3] sm:$0xff]
    %v101 = vld [vmem:[#allocation3 + $0x8] sm:$0xff]
    %v102 = vld [vmem:[#allocation3 + $0x10] sm:$0xff]
    %v103 = vld [vmem:[#allocation3 + $0x18] sm:$0xff]
    %v104 = vld [vmem:[#allocation3 + $0x20] sm:$0xff]
    %v105 = vld [vmem:[#allocation3 + $0x28] sm:$0xff]
    %v106 = vld [vmem:[#allocation3 + $0x30] sm:$0xff]
    %v107 = vld [vmem:[#allocation5] sm:$0x1]
    %v109 = vlaneseq
    %v110 = vshrl.u32 %v109, 7
    %v111 = vsub.s32 0, %v110
    %v112 = vrot.slane %v107, %v111
    %vm114 = vcmask 457728
    %v116 = vsel %vm114, %v98, 0
    %v119 = vsel %vm114, %v99, 0
    %121 = vmatprep.subr.mxu0 0.0
    %122 = vmatpush1.msra.mxu0 %v100
    %123 = vmatprep.subr.mxu0 0.0
    %124 = vmatpush1.msra.mxu0 %v101
    %125 = vmatprep.subr.mxu0 0.0
    %126 = vmatpush1.msra.mxu0 %v102
    %127 = vmatprep.subr.mxu0 0.0
    %128 = vmatpush1.msra.mxu0 %v103
    %129 = vmatprep.subr.mxu0 0.0
    %130 = vmatpush1.msra.mxu0 %v104
    %131 = vmatprep.subr.mxu0 0.0
    %132 = vmatpush1.msra.mxu0 %v105
    %133 = vmatprep.subr.mxu0 0.0
    %134 = vmatpush1.msra.mxu0 %v106
    %135 = vmatprep.subr.mxu0 0.0
    %136 = vmatpush1.msra.mxu0 0.0
    %137 = vmatprep.subr.mxu0 0.0
    %138 = vmatpush1.msra.mxu0 0.0
    %139 = vmatprep.subr.mxu0 0.0
    %140 = vmatpush1.msra.mxu0 0.0
    %141 = vmatprep.subr.mxu0 0.0
    %142 = vmatpush1.msra.mxu0 0.0
    %143 = vmatprep.subr.mxu0 0.0
    %144 = vmatpush1.msra.mxu0 0.0
    %145 = vmatprep.subr.mxu0 0.0
    %146 = vmatpush1.msra.mxu0 0.0
    %147 = vmatprep.subr.mxu0 0.0
    %148 = vmatpush1.msra.mxu0 0.0
    %149 = vmatprep.subr.mxu0 0.0
    %150 = vmatpush1.msra.mxu0 0.0
    %151 = vmatprep.subr.mxu0 0.0
    %152 = vmatpush1.msra.mxu0 0.0
    %153 = vmatprep.subr.mxu0 0.0
    %154 = vmatpush1.msra.mxu0 0.0
    %155 = vmatprep.subr.mxu0 0.0
    %156 = vmatpush1.msra.mxu0 0.0
    %157 = vmatprep.subr.mxu0 0.0
    %158 = vmatpush1.msra.mxu0 0.0
    %159 = vmatprep.subr.mxu0 0.0
    %160 = vmatpush1.msra.mxu0 0.0
    %161 = vmatprep.subr.mxu0 0.0
    %162 = vmatpush1.msra.mxu0 0.0
    %163 = vmatprep.subr.mxu0 0.0
    %164 = vmatpush1.msra.mxu0 0.0
    %165 = vmatprep.subr.mxu0 0.0
    %166 = vmatpush1.msra.mxu0 0.0
    %167 = vmatprep.subr.mxu0 0.0
    %168 = vmatpush1.msra.mxu0 0.0
    %169 = vmatprep.subr.mxu0 0.0
    %170 = vmatpush1.msra.mxu0 0.0
    %171 = vmatprep.subr.mxu0 0.0
    %172 = vmatpush1.msra.mxu0 0.0
    %173 = vmatprep.subr.mxu0 0.0
    %174 = vmatpush1.msra.mxu0 0.0
    %175 = vmatprep.subr.mxu0 0.0
    %176 = vmatpush1.msra.mxu0 0.0
    %177 = vmatprep.subr.mxu0 0.0
    %178 = vmatpush1.msra.mxu0 0.0
    %179 = vmatprep.subr.mxu0 0.0
    %180 = vmatpush1.msra.mxu0 0.0
    %181 = vmatprep.subr.mxu0 0.0
    %182 = vmatpush1.msra.mxu0 0.0
    %183 = vmatprep.subr.mxu0 0.0
    %184 = vmatpush1.msra.mxu0 0.0
    %185 = vmatprep.mubr.f32.mxu0 0.0
    %186 = vmatmul.mubr.f32.gmra.mrb[0].mxu0 %v116
    %v187 = vpop.f32.mrb[0].mxu0
    %v188 = vadd.f32 %v112, %v187
    %v189 = vpop.f32.mrb[0].mxu0
    %190 = vmatprep.mubr.f32.mxu0 0.0
    %191 = vmatmul.mubr.f32.gmra.mrb[0].mxu0 %v119
    %v192 = vpop.f32.mrb[0].mxu0
    %v193 = vadd.f32 %v112, %v192
    %v194 = vpop.f32.mrb[0].mxu0
    %195 = vdwg.mxu0
    %v196 = vld [vmem:[%s3] sm:$0xf]
    %v197 = vld [vmem:[%s3 + $0x4] sm:$0xf]
    %v198 = vld [vmem:[%s3 + $0x8] sm:$0xf]
    %v199 = vld [vmem:[%s3 + $0xc] sm:$0xf]
    %v200 = vld [vmem:[%s6] sm:$0xf]
    %v201 = vld [vmem:[%s6 + $0x4] sm:$0xf]
    %v202 = vld [vmem:[%s6 + $0x8] sm:$0xf]
    %v203 = vld [vmem:[%s6 + $0xc] sm:$0xf]
    %v208 = vunpack.c.l.b16 %v196
    %v209 = vunpack.c.l.b16 %v197
    %v210 = vunpack.c.l.b16 %v198
    %v211 = vunpack.c.l.b16 %v199
    %v212 = vpack.c.b16 %v209, %v208
    %v213 = vpack.c.b16 %v211, %v210
    %vm216 = vcmask 261120
    %v218 = vsel %vm216, 0, 0
    %220 = vmatprep.subr.bf16.mxu0 0
    %221 = vmatpush1.bf16.msra.mxu0 %v212
    %222 = vmatprep.subr.bf16.mxu0 0
    %223 = vmatpush1.bf16.msra.mxu0 %v213
    %224 = vmatprep.subr.bf16.mxu0 0
    %225 = vmatpush1.bf16.msra.mxu0 0
    %226 = vmatprep.subr.bf16.mxu0 0
    %227 = vmatpush1.bf16.msra.mxu0 0
    %228 = vmatprep.subr.bf16.mxu0 0
    %229 = vmatpush1.bf16.msra.mxu0 0
    %230 = vmatprep.subr.bf16.mxu0 0
    %231 = vmatpush1.bf16.msra.mxu0 0
    %232 = vmatprep.subr.bf16.mxu0 0
    %233 = vmatpush1.bf16.msra.mxu0 0
    %234 = vmatprep.subr.bf16.mxu0 0
    %235 = vmatpush1.bf16.msra.mxu0 0
    %236 = vmatprep.subr.bf16.mxu0 0
    %237 = vmatpush1.bf16.msra.mxu0 0
    %238 = vmatprep.subr.bf16.mxu0 0
    %239 = vmatpush1.bf16.msra.mxu0 0
    %240 = vmatprep.subr.bf16.mxu0 0
    %241 = vmatpush1.bf16.msra.mxu0 0
    %242 = vmatprep.subr.bf16.mxu0 0
    %243 = vmatpush1.bf16.msra.mxu0 0
    %244 = vmatprep.subr.bf16.mxu0 0
    %245 = vmatpush1.bf16.msra.mxu0 0
    %246 = vmatprep.subr.bf16.mxu0 0
    %247 = vmatpush1.bf16.msra.mxu0 0
    %248 = vmatprep.subr.bf16.mxu0 0
    %249 = vmatpush1.bf16.msra.mxu0 0
    %250 = vmatprep.subr.bf16.mxu0 0
    %251 = vmatpush1.bf16.msra.mxu0 0
    %252 = vmatprep.mubr.bf16.mxu0 0
    %253 = vmatmul.mubr.bf16.gmra.mrb[0].mxu0 %v218
    %v254 = vpop.f32.mrb[0].mxu0
    %v255 = vadd.f32 0.0, %v254
    %v256 = vpop.f32.mrb[0].mxu0
    %v257 = vpop.f32.mrb[0].mxu0
    %v258 = vpop.f32.mrb[0].mxu0
    %259 = vdwg.mxu0
    %v260 = vadd.f32 %v188, %v255
    %v261 = vxor.u32 %v260, 2147483648
    %v262 = vmul.f32 %v261, 1.442695
    %v263 = vpow.pop %v262
    %v264 = vadd.f32 %v263, 1.0
    %v265 = vrcp.pop %v264
    %v266 = vmul.f32 1.0, %v265
    %v267 = vtanh.pop %v260
    %v268 = vmul.f32 %v266, 0.0
    %270 = vrot.lane.b32.xlu0 %v267, 64
    %v271 = vpop.permute.xlu0 %270
    %v273 = vmul.f32 %v266, %v271
    %275 = vrot.lane.b32.xlu0 %v273, 32
    %v276 = vpop.permute.xlu0 %275
    %v278 = vadd.f32 %v268, %v276
    %v279 = vtanh.pop %v278
    %281 = vrot.lane.b32.xlu0 %v279, 64
    %v282 = vpop.permute.xlu0 %281
    %v284 = vmul.f32 %v266, %v282
    %v285 = vpack.c.bf16 %v284, %v284
    %287 = vrot.lane.b32.xlu0 %v285, 32
    %v288 = vpop.permute.xlu0 %287
    %v290 = vsel %vm216, %v288, 0
    %292 = vmatprep.subr.bf16.mxu0 0
    %293 = vmatpush1.bf16.msra.mxu0 %v212
    %294 = vmatprep.subr.bf16.mxu0 0
    %295 = vmatpush1.bf16.msra.mxu0 %v213
    %296 = vmatprep.subr.bf16.mxu0 0
    %297 = vmatpush1.bf16.msra.mxu0 0
    %298 = vmatprep.subr.bf16.mxu0 0
    %299 = vmatpush1.bf16.msra.mxu0 0
    %300 = vmatprep.subr.bf16.mxu0 0
    %301 = vmatpush1.bf16.msra.mxu0 0
    %302 = vmatprep.subr.bf16.mxu0 0
    %303 = vmatpush1.bf16.msra.mxu0 0
    %304 = vmatprep.subr.bf16.mxu0 0
    %305 = vmatpush1.bf16.msra.mxu0 0
    %306 = vmatprep.subr.bf16.mxu0 0
    %307 = vmatpush1.bf16.msra.mxu0 0
    %308 = vmatprep.subr.bf16.mxu0 0
    %309 = vmatpush1.bf16.msra.mxu0 0
    %310 = vmatprep.subr.bf16.mxu0 0
    %311 = vmatpush1.bf16.msra.mxu0 0
    %312 = vmatprep.subr.bf16.mxu0 0
    %313 = vmatpush1.bf16.msra.mxu0 0
    %314 = vmatprep.subr.bf16.mxu0 0
    %315 = vmatpush1.bf16.msra.mxu0 0
    %316 = vmatprep.subr.bf16.mxu0 0
    %317 = vmatpush1.bf16.msra.mxu0 0
    %318 = vmatprep.subr.bf16.mxu0 0
    %319 = vmatpush1.bf16.msra.mxu0 0
    %320 = vmatprep.subr.bf16.mxu0 0
    %321 = vmatpush1.bf16.msra.mxu0 0
    %322 = vmatprep.subr.bf16.mxu0 0
    %323 = vmatpush1.bf16.msra.mxu0 0
    %324 = vmatprep.mubr.bf16.mxu0 0
    %325 = vmatmul.mubr.bf16.gmra.mrb[0].mxu0 %v290
    %v326 = vpop.f32.mrb[0].mxu0
    %v327 = vadd.f32 0.0, %v326
    %v328 = vpop.f32.mrb[0].mxu0
    %v329 = vpop.f32.mrb[0].mxu0
    %v330 = vpop.f32.mrb[0].mxu0
    %331 = vdwg.mxu0
    %v333 = vrot.slane %v327, 6
    %v335 = vadd.f32 %v188, %v333
    %v336 = vxor.u32 %v335, 2147483648
    %v337 = vmul.f32 %v336, 1.442695
    %v338 = vpow.pop %v337
    %v339 = vadd.f32 %v338, 1.0
    %v340 = vrcp.pop %v339
    %v341 = vmul.f32 1.0, %v340
    %v342 = vtanh.pop %v335
    %v344 = vrot.slane %v278, 6
    %v346 = vmul.f32 %v341, %v344
    %348 = vrot.lane.b32.xlu0 %v342, 64
    %v349 = vpop.permute.xlu0 %348
    %v351 = vmul.f32 %v341, %v349
    %353 = vrot.lane.b32.xlu0 %v351, 32
    %v354 = vpop.permute.xlu0 %353
    %v356 = vadd.f32 %v346, %v354
    %v357 = vtanh.pop %v356
    %359 = vrot.lane.b32.xlu0 %v357, 64
    %v360 = vpop.permute.xlu0 %359
    %v362 = vmul.f32 %v341, %v360
    %v363 = vpack.c.bf16 %v362, %v362
    %v365 = vrot.slane %v363, 1
    %366 = vrot.lane.b32.xlu0 %v365, 32
    %v367 = vpop.permute.xlu0 %366
    %v369 = vsel %vm216, %v367, 0
    %371 = vmatprep.subr.bf16.mxu0 0
    %372 = vmatpush1.bf16.msra.mxu0 %v212
    %373 = vmatprep.subr.bf16.mxu0 0
    %374 = vmatpush1.bf16.msra.mxu0 %v213
    %375 = vmatprep.subr.bf16.mxu0 0
    %376 = vmatpush1.bf16.msra.mxu0 0
    %377 = vmatprep.subr.bf16.mxu0 0
    %378 = vmatpush1.bf16.msra.mxu0 0
    %379 = vmatprep.subr.bf16.mxu0 0
    %380 = vmatpush1.bf16.msra.mxu0 0
    %381 = vmatprep.subr.bf16.mxu0 0
    %382 = vmatpush1.bf16.msra.mxu0 0
    %383 = vmatprep.subr.bf16.mxu0 0
    %384 = vmatpush1.bf16.msra.mxu0 0
    %385 = vmatprep.subr.bf16.mxu0 0
    %386 = vmatpush1.bf16.msra.mxu0 0
    %387 = vmatprep.subr.bf16.mxu0 0
    %388 = vmatpush1.bf16.msra.mxu0 0
    %389 = vmatprep.subr.bf16.mxu0 0
    %390 = vmatpush1.bf16.msra.mxu0 0
    %391 = vmatprep.subr.bf16.mxu0 0
    %392 = vmatpush1.bf16.msra.mxu0 0
    %393 = vmatprep.subr.bf16.mxu0 0
    %394 = vmatpush1.bf16.msra.mxu0 0
    %395 = vmatprep.subr.bf16.mxu0 0
    %396 = vmatpush1.bf16.msra.mxu0 0
    %397 = vmatprep.subr.bf16.mxu0 0
    %398 = vmatpush1.bf16.msra.mxu0 0
    %399 = vmatprep.subr.bf16.mxu0 0
    %400 = vmatpush1.bf16.msra.mxu0 0
    %401 = vmatprep.subr.bf16.mxu0 0
    %402 = vmatpush1.bf16.msra.mxu0 0
    %403 = vmatprep.mubr.bf16.mxu0 0
    %404 = vmatmul.mubr.bf16.gmra.mrb[0].mxu0 %v369
    %v405 = vpop.f32.mrb[0].mxu0
    %v406 = vadd.f32 0.0, %v405
    %v407 = vpop.f32.mrb[0].mxu0
    %v408 = vpop.f32.mrb[0].mxu0
    %v409 = vpop.f32.mrb[0].mxu0
    %410 = vdwg.mxu0
    %v412 = vrot.slane %v406, 4
    %v414 = vadd.f32 %v188, %v412
    %v415 = vxor.u32 %v414, 2147483648
    %v416 = vmul.f32 %v415, 1.442695
    %v417 = vpow.pop %v416
    %v418 = vadd.f32 %v417, 1.0
    %v419 = vrcp.pop %v418
    %v420 = vmul.f32 1.0, %v419
    %v421 = vtanh.pop %v414
    %v423 = vrot.slane %v356, 6
    %v425 = vmul.f32 %v420, %v423
    %427 = vrot.lane.b32.xlu0 %v421, 64
    %v428 = vpop.permute.xlu0 %427
    %v430 = vmul.f32 %v420, %v428
    %432 = vrot.lane.b32.xlu0 %v430, 32
    %v433 = vpop.permute.xlu0 %432
    %v435 = vadd.f32 %v425, %v433
    %v436 = vtanh.pop %v435
    %438 = vrot.lane.b32.xlu0 %v436, 64
    %v439 = vpop.permute.xlu0 %438
    %v441 = vmul.f32 %v420, %v439
    %v442 = vpack.c.bf16 %v441, %v441
    %v444 = vrot.slane %v442, 2
    %445 = vrot.lane.b32.xlu0 %v444, 32
    %v446 = vpop.permute.xlu0 %445
    %v448 = vsel %vm216, %v446, 0
    %450 = vmatprep.subr.bf16.mxu0 0
    %451 = vmatpush1.bf16.msra.mxu0 %v212
    %452 = vmatprep.subr.bf16.mxu0 0
    %453 = vmatpush1.bf16.msra.mxu0 %v213
    %454 = vmatprep.subr.bf16.mxu0 0
    %455 = vmatpush1.bf16.msra.mxu0 0
    %456 = vmatprep.subr.bf16.mxu0 0
    %457 = vmatpush1.bf16.msra.mxu0 0
    %458 = vmatprep.subr.bf16.mxu0 0
    %459 = vmatpush1.bf16.msra.mxu0 0
    %460 = vmatprep.subr.bf16.mxu0 0
    %461 = vmatpush1.bf16.msra.mxu0 0
    %462 = vmatprep.subr.bf16.mxu0 0
    %463 = vmatpush1.bf16.msra.mxu0 0
    %464 = vmatprep.subr.bf16.mxu0 0
    %465 = vmatpush1.bf16.msra.mxu0 0
    %466 = vmatprep.subr.bf16.mxu0 0
    %467 = vmatpush1.bf16.msra.mxu0 0
    %468 = vmatprep.subr.bf16.mxu0 0
    %469 = vmatpush1.bf16.msra.mxu0 0
    %470 = vmatprep.subr.bf16.mxu0 0
    %471 = vmatpush1.bf16.msra.mxu0 0
    %472 = vmatprep.subr.bf16.mxu0 0
    %473 = vmatpush1.bf16.msra.mxu0 0
    %474 = vmatprep.subr.bf16.mxu0 0
    %475 = vmatpush1.bf16.msra.mxu0 0
    %476 = vmatprep.subr.bf16.mxu0 0
    %477 = vmatpush1.bf16.msra.mxu0 0
    %478 = vmatprep.subr.bf16.mxu0 0
    %479 = vmatpush1.bf16.msra.mxu0 0
    %480 = vmatprep.subr.bf16.mxu0 0
    %481 = vmatpush1.bf16.msra.mxu0 0
    %482 = vmatprep.mubr.bf16.mxu0 0
    %483 = vmatmul.mubr.bf16.gmra.mrb[0].mxu0 %v448
    %v484 = vpop.f32.mrb[0].mxu0
    %v485 = vadd.f32 0.0, %v484
    %v486 = vpop.f32.mrb[0].mxu0
    %v487 = vpop.f32.mrb[0].mxu0
    %v488 = vpop.f32.mrb[0].mxu0
    %489 = vdwg.mxu0
    %v491 = vrot.slane %v485, 2
    %v493 = vadd.f32 %v188, %v491
    %v494 = vxor.u32 %v493, 2147483648
    %v495 = vmul.f32 %v494, 1.442695
    %v496 = vpow.pop %v495
    %v497 = vadd.f32 %v496, 1.0
    %v498 = vrcp.pop %v497
    %v499 = vmul.f32 1.0, %v498
    %v500 = vtanh.pop %v493
    %v502 = vrot.slane %v435, 6
    %v504 = vmul.f32 %v499, %v502
    %506 = vrot.lane.b32.xlu0 %v500, 64
    %v507 = vpop.permute.xlu0 %506
    %v509 = vmul.f32 %v499, %v507
    %511 = vrot.lane.b32.xlu0 %v509, 32
    %v512 = vpop.permute.xlu0 %511
    %v514 = vadd.f32 %v504, %v512
    %v515 = vtanh.pop %v514
    %517 = vrot.lane.b32.xlu0 %v515, 64
    %v518 = vpop.permute.xlu0 %517
    %v520 = vmul.f32 %v499, %v518
    %v521 = vpack.c.bf16 %v520, %v520
    %v523 = vrot.slane %v521, 3
    %524 = vrot.lane.b32.xlu0 %v523, 32
    %v525 = vpop.permute.xlu0 %524
    %v527 = vsel %vm216, %v525, 0
    %529 = vmatprep.subr.bf16.mxu0 0
    %530 = vmatpush1.bf16.msra.mxu0 %v212
    %531 = vmatprep.subr.bf16.mxu0 0
    %532 = vmatpush1.bf16.msra.mxu0 %v213
    %533 = vmatprep.subr.bf16.mxu0 0
    %534 = vmatpush1.bf16.msra.mxu0 0
    %535 = vmatprep.subr.bf16.mxu0 0
    %536 = vmatpush1.bf16.msra.mxu0 0
    %537 = vmatprep.subr.bf16.mxu0 0
    %538 = vmatpush1.bf16.msra.mxu0 0
    %539 = vmatprep.subr.bf16.mxu0 0
    %540 = vmatpush1.bf16.msra.mxu0 0
    %541 = vmatprep.subr.bf16.mxu0 0
    %542 = vmatpush1.bf16.msra.mxu0 0
    %543 = vmatprep.subr.bf16.mxu0 0
    %544 = vmatpush1.bf16.msra.mxu0 0
    %545 = vmatprep.subr.bf16.mxu0 0
    %546 = vmatpush1.bf16.msra.mxu0 0
    %547 = vmatprep.subr.bf16.mxu0 0
    %548 = vmatpush1.bf16.msra.mxu0 0
    %549 = vmatprep.subr.bf16.mxu0 0
    %550 = vmatpush1.bf16.msra.mxu0 0
    %551 = vmatprep.subr.bf16.mxu0 0
    %552 = vmatpush1.bf16.msra.mxu0 0
    %553 = vmatprep.subr.bf16.mxu0 0
    %554 = vmatpush1.bf16.msra.mxu0 0
    %555 = vmatprep.subr.bf16.mxu0 0
    %556 = vmatpush1.bf16.msra.mxu0 0
    %557 = vmatprep.subr.bf16.mxu0 0
    %558 = vmatpush1.bf16.msra.mxu0 0
    %559 = vmatprep.subr.bf16.mxu0 0
    %560 = vmatpush1.bf16.msra.mxu0 0
    %561 = vmatprep.mubr.bf16.mxu0 0
    %562 = vmatmul.mubr.bf16.gmra.mrb[0].mxu0 %v527
    %v563 = vpop.f32.mrb[0].mxu0
    %v564 = vadd.f32 0.0, %v563
    %v565 = vpop.f32.mrb[0].mxu0
    %v566 = vpop.f32.mrb[0].mxu0
    %v567 = vpop.f32.mrb[0].mxu0
    %568 = vdwg.mxu0
    %v569 = vadd.f32 %v193, %v564
    %v570 = vxor.u32 %v569, 2147483648
    %v571 = vmul.f32 %v570, 1.442695
    %v572 = vpow.pop %v571
    %v573 = vadd.f32 %v572, 1.0
    %v574 = vrcp.pop %v573
    %v575 = vmul.f32 1.0, %v574
    %v576 = vtanh.pop %v569
    %v578 = vrot.slane %v514, 6
    %v580 = vmul.f32 %v575, %v578
    %582 = vrot.lane.b32.xlu0 %v576, 64
    %v583 = vpop.permute.xlu0 %582
    %v585 = vmul.f32 %v575, %v583
    %587 = vrot.lane.b32.xlu0 %v585, 32
    %v588 = vpop.permute.xlu0 %587
    %v590 = vadd.f32 %v580, %v588
    %v591 = vtanh.pop %v590
    %593 = vrot.lane.b32.xlu0 %v591, 64
    %v594 = vpop.permute.xlu0 %593
    %v596 = vmul.f32 %v575, %v594
    %v597 = vpack.c.bf16 %v596, %v596
    %599 = vrot.lane.b32.xlu0 %v597, 32
    %v600 = vpop.permute.xlu0 %599
    %v602 = vsel %vm216, %v600, 0
    %604 = vmatprep.subr.bf16.mxu0 0
    %605 = vmatpush1.bf16.msra.mxu0 %v212
    %606 = vmatprep.subr.bf16.mxu0 0
    %607 = vmatpush1.bf16.msra.mxu0 %v213
    %608 = vmatprep.subr.bf16.mxu0 0
    %609 = vmatpush1.bf16.msra.mxu0 0
    %610 = vmatprep.subr.bf16.mxu0 0
    %611 = vmatpush1.bf16.msra.mxu0 0
    %612 = vmatprep.subr.bf16.mxu0 0
    %613 = vmatpush1.bf16.msra.mxu0 0
    %614 = vmatprep.subr.bf16.mxu0 0
    %615 = vmatpush1.bf16.msra.mxu0 0
    %616 = vmatprep.subr.bf16.mxu0 0
    %617 = vmatpush1.bf16.msra.mxu0 0
    %618 = vmatprep.subr.bf16.mxu0 0
    %619 = vmatpush1.bf16.msra.mxu0 0
    %620 = vmatprep.subr.bf16.mxu0 0
    %621 = vmatpush1.bf16.msra.mxu0 0
    %622 = vmatprep.subr.bf16.mxu0 0
    %623 = vmatpush1.bf16.msra.mxu0 0
    %624 = vmatprep.subr.bf16.mxu0 0
    %625 = vmatpush1.bf16.msra.mxu0 0
    %626 = vmatprep.subr.bf16.mxu0 0
    %627 = vmatpush1.bf16.msra.mxu0 0
    %628 = vmatprep.subr.bf16.mxu0 0
    %629 = vmatpush1.bf16.msra.mxu0 0
    %630 = vmatprep.subr.bf16.mxu0 0
    %631 = vmatpush1.bf16.msra.mxu0 0
    %632 = vmatprep.subr.bf16.mxu0 0
    %633 = vmatpush1.bf16.msra.mxu0 0
    %634 = vmatprep.subr.bf16.mxu0 0
    %635 = vmatpush1.bf16.msra.mxu0 0
    %636 = vmatprep.mubr.bf16.mxu0 0
    %637 = vmatmul.mubr.bf16.gmra.mrb[0].mxu0 %v602
    %v638 = vpop.f32.mrb[0].mxu0
    %v639 = vadd.f32 0.0, %v638
    %v640 = vpop.f32.mrb[0].mxu0
    %v641 = vpop.f32.mrb[0].mxu0
    %v642 = vpop.f32.mrb[0].mxu0
    %643 = vdwg.mxu0
    %v645 = vrot.slane %v639, 6
    %v647 = vadd.f32 %v193, %v645
    %v648 = vxor.u32 %v647, 2147483648
    %v649 = vmul.f32 %v648, 1.442695
    %v650 = vpow.pop %v649
    %v651 = vadd.f32 %v650, 1.0
    %v652 = vrcp.pop %v651
    %v653 = vmul.f32 1.0, %v652
    %v654 = vtanh.pop %v647
    %v656 = vrot.slane %v590, 6
    %v658 = vmul.f32 %v653, %v656
    %660 = vrot.lane.b32.xlu0 %v654, 64
    %v661 = vpop.permute.xlu0 %660
    %v663 = vmul.f32 %v653, %v661
    %665 = vrot.lane.b32.xlu0 %v663, 32
    %v666 = vpop.permute.xlu0 %665
    %v668 = vadd.f32 %v658, %v666
    %v669 = vtanh.pop %v668
    %671 = vrot.lane.b32.xlu0 %v669, 64
    %v672 = vpop.permute.xlu0 %671
    %v674 = vmul.f32 %v653, %v672
    %v675 = vpack.c.bf16 %v674, %v674
    %v677 = vrot.slane %v675, 1
    %678 = vrot.lane.b32.xlu0 %v677, 32
    %v679 = vpop.permute.xlu0 %678
    %v681 = vsel %vm216, %v679, 0
    %683 = vmatprep.subr.bf16.mxu0 0
    %684 = vmatpush1.bf16.msra.mxu0 %v212
    %685 = vmatprep.subr.bf16.mxu0 0
    %686 = vmatpush1.bf16.msra.mxu0 %v213
    %687 = vmatprep.subr.bf16.mxu0 0
    %688 = vmatpush1.bf16.msra.mxu0 0
    %689 = vmatprep.subr.bf16.mxu0 0
    %690 = vmatpush1.bf16.msra.mxu0 0
    %691 = vmatprep.subr.bf16.mxu0 0
    %692 = vmatpush1.bf16.msra.mxu0 0
    %693 = vmatprep.subr.bf16.mxu0 0
    %694 = vmatpush1.bf16.msra.mxu0 0
    %695 = vmatprep.subr.bf16.mxu0 0
    %696 = vmatpush1.bf16.msra.mxu0 0
    %697 = vmatprep.subr.bf16.mxu0 0
    %698 = vmatpush1.bf16.msra.mxu0 0
    %699 = vmatprep.subr.bf16.mxu0 0
    %700 = vmatpush1.bf16.msra.mxu0 0
    %701 = vmatprep.subr.bf16.mxu0 0
    %702 = vmatpush1.bf16.msra.mxu0 0
    %703 = vmatprep.subr.bf16.mxu0 0
    %704 = vmatpush1.bf16.msra.mxu0 0
    %705 = vmatprep.subr.bf16.mxu0 0
    %706 = vmatpush1.bf16.msra.mxu0 0
    %707 = vmatprep.subr.bf16.mxu0 0
    %708 = vmatpush1.bf16.msra.mxu0 0
    %709 = vmatprep.subr.bf16.mxu0 0
    %710 = vmatpush1.bf16.msra.mxu0 0
    %711 = vmatprep.subr.bf16.mxu0 0
    %712 = vmatpush1.bf16.msra.mxu0 0
    %713 = vmatprep.subr.bf16.mxu0 0
    %714 = vmatpush1.bf16.msra.mxu0 0
    %715 = vmatprep.mubr.bf16.mxu0 0
    %716 = vmatmul.mubr.bf16.gmra.mrb[0].mxu0 %v681
    %v717 = vpop.f32.mrb[0].mxu0
    %v718 = vadd.f32 0.0, %v717
    %v719 = vpop.f32.mrb[0].mxu0
    %v720 = vpop.f32.mrb[0].mxu0
    %v721 = vpop.f32.mrb[0].mxu0
    %722 = vdwg.mxu0
    %v724 = vrot.slane %v718, 4
    %v726 = vadd.f32 %v193, %v724
    %v727 = vxor.u32 %v726, 2147483648
    %v728 = vmul.f32 %v727, 1.442695
    %v729 = vpow.pop %v728
    %v730 = vadd.f32 %v729, 1.0
    %v731 = vrcp.pop %v730
    %v732 = vmul.f32 1.0, %v731
    %v733 = vtanh.pop %v726
    %v735 = vrot.slane %v668, 6
    %v737 = vmul.f32 %v732, %v735
    %739 = vrot.lane.b32.xlu0 %v733, 64
    %v740 = vpop.permute.xlu0 %739
    %v742 = vmul.f32 %v732, %v740
    %744 = vrot.lane.b32.xlu0 %v742, 32
    %v745 = vpop.permute.xlu0 %744
    %v747 = vadd.f32 %v737, %v745
    %v748 = vtanh.pop %v747
    %750 = vrot.lane.b32.xlu0 %v748, 64
    %v751 = vpop.permute.xlu0 %750
    %v753 = vmul.f32 %v732, %v751
    %v754 = vpack.c.bf16 %v753, %v753
    %v756 = vrot.slane %v754, 2
    %757 = vrot.lane.b32.xlu0 %v756, 32
    %v758 = vpop.permute.xlu0 %757
    %v760 = vsel %vm216, %v758, 0
    %762 = vmatprep.subr.bf16.mxu0 0
    %763 = vmatpush1.bf16.msra.mxu0 %v212
    %764 = vmatprep.subr.bf16.mxu0 0
    %765 = vmatpush1.bf16.msra.mxu0 %v213
    %766 = vmatprep.subr.bf16.mxu0 0
    %767 = vmatpush1.bf16.msra.mxu0 0
    %768 = vmatprep.subr.bf16.mxu0 0
    %769 = vmatpush1.bf16.msra.mxu0 0
    %770 = vmatprep.subr.bf16.mxu0 0
    %771 = vmatpush1.bf16.msra.mxu0 0
    %772 = vmatprep.subr.bf16.mxu0 0
    %773 = vmatpush1.bf16.msra.mxu0 0
    %774 = vmatprep.subr.bf16.mxu0 0
    %775 = vmatpush1.bf16.msra.mxu0 0
    %776 = vmatprep.subr.bf16.mxu0 0
    %777 = vmatpush1.bf16.msra.mxu0 0
    %778 = vmatprep.subr.bf16.mxu0 0
    %779 = vmatpush1.bf16.msra.mxu0 0
    %780 = vmatprep.subr.bf16.mxu0 0
    %781 = vmatpush1.bf16.msra.mxu0 0
    %782 = vmatprep.subr.bf16.mxu0 0
    %783 = vmatpush1.bf16.msra.mxu0 0
    %784 = vmatprep.subr.bf16.mxu0 0
    %785 = vmatpush1.bf16.msra.mxu0 0
    %786 = vmatprep.subr.bf16.mxu0 0
    %787 = vmatpush1.bf16.msra.mxu0 0
    %788 = vmatprep.subr.bf16.mxu0 0
    %789 = vmatpush1.bf16.msra.mxu0 0
    %790 = vmatprep.subr.bf16.mxu0 0
    %791 = vmatpush1.bf16.msra.mxu0 0
    %792 = vmatprep.subr.bf16.mxu0 0
    %793 = vmatpush1.bf16.msra.mxu0 0
    %794 = vmatprep.mubr.bf16.mxu0 0
    %795 = vmatmul.mubr.bf16.gmra.mrb[0].mxu0 %v760
    %v796 = vpop.f32.mrb[0].mxu0
    %v797 = vadd.f32 0.0, %v796
    %v798 = vpop.f32.mrb[0].mxu0
    %v799 = vpop.f32.mrb[0].mxu0
    %v800 = vpop.f32.mrb[0].mxu0
    %801 = vdwg.mxu0
    %v803 = vrot.slane %v797, 2
    %v805 = vadd.f32 %v193, %v803
    %v806 = vxor.u32 %v805, 2147483648
    %v807 = vmul.f32 %v806, 1.442695
    %v808 = vpow.pop %v807
    %v809 = vadd.f32 %v808, 1.0
    %v810 = vrcp.pop %v809
    %v811 = vmul.f32 1.0, %v810
    %v812 = vtanh.pop %v805
    %v814 = vrot.slane %v747, 6
    %v816 = vmul.f32 %v811, %v814
    %818 = vrot.lane.b32.xlu0 %v812, 64
    %v819 = vpop.permute.xlu0 %818
    %v821 = vmul.f32 %v811, %v819
    %823 = vrot.lane.b32.xlu0 %v821, 32
    %v824 = vpop.permute.xlu0 %823
    %v826 = vadd.f32 %v816, %v824
    %v827 = vtanh.pop %v826
    %829 = vrot.lane.b32.xlu0 %v827, 64
    %v830 = vpop.permute.xlu0 %829
    %v832 = vmul.f32 %v811, %v830
    %vm833 = vcmask 1041408
    %v834 = vsel %vm833, %v284, %v362
    %vm835 = vcmask 1043456
    %v836 = vsel %vm835, %v834, %v441
    %vm837 = vcmask 1045504
    %v838 = vsel %vm837, %v836, %v520
    %v839 = vsel %vm833, %v596, %v674
    %v840 = vsel %vm835, %v839, %v753
    %v841 = vsel %vm837, %v840, %v832
    %v842 = vld [vmem:[%s4] sm:$0xff]
    %v843 = vld [vmem:[%s4 + $0x8] sm:$0xff]
    %v844 = vld [vmem:[%s4 + $0x10] sm:$0xff]
    %v845 = vld [vmem:[%s4 + $0x18] sm:$0xff]
    %v846 = vld [vmem:[#allocation7] sm:$0x1]
    %v848 = vlaneseq
    %v849 = vshrl.u32 %v848, 7
    %v850 = vsub.s32 0, %v849
    %v851 = vrot.slane %v846, %v850
    %855 = vrot.lane.b32.xlu0 %v838, 32
    %v856 = vpop.permute.xlu0 %855
    %857 = vrot.lane.b32.xlu0 %v841, 32
    %v858 = vpop.permute.xlu0 %857
    %v859 = vsel %vm216, %v856, 0
    %v861 = vsel %vm216, %v858, 0
    %863 = vmatprep.subr.mxu0 0.0
    %864 = vmatpush1.msra.mxu0 %v842
    %865 = vmatprep.subr.mxu0 0.0
    %866 = vmatpush1.msra.mxu0 %v843
    %867 = vmatprep.subr.mxu0 0.0
    %868 = vmatpush1.msra.mxu0 %v844
    %869 = vmatprep.subr.mxu0 0.0
    %870 = vmatpush1.msra.mxu0 %v845
    %871 = vmatprep.subr.mxu0 0.0
    %872 = vmatpush1.msra.mxu0 0.0
    %873 = vmatprep.subr.mxu0 0.0
    %874 = vmatpush1.msra.mxu0 0.0
    %875 = vmatprep.subr.mxu0 0.0
    %876 = vmatpush1.msra.mxu0 0.0
    %877 = vmatprep.subr.mxu0 0.0
    %878 = vmatpush1.msra.mxu0 0.0
    %879 = vmatprep.subr.mxu0 0.0
    %880 = vmatpush1.msra.mxu0 0.0
    %881 = vmatprep.subr.mxu0 0.0
    %882 = vmatpush1.msra.mxu0 0.0
    %883 = vmatprep.subr.mxu0 0.0
    %884 = vmatpush1.msra.mxu0 0.0
    %885 = vmatprep.subr.mxu0 0.0
    %886 = vmatpush1.msra.mxu0 0.0
    %887 = vmatprep.subr.mxu0 0.0
    %888 = vmatpush1.msra.mxu0 0.0
    %889 = vmatprep.subr.mxu0 0.0
    %890 = vmatpush1.msra.mxu0 0.0
    %891 = vmatprep.subr.mxu0 0.0
    %892 = vmatpush1.msra.mxu0 0.0
    %893 = vmatprep.subr.mxu0 0.0
    %894 = vmatpush1.msra.mxu0 0.0
    %895 = vmatprep.subr.mxu0 0.0
    %896 = vmatpush1.msra.mxu0 0.0
    %897 = vmatprep.subr.mxu0 0.0
    %898 = vmatpush1.msra.mxu0 0.0
    %899 = vmatprep.subr.mxu0 0.0
    %900 = vmatpush1.msra.mxu0 0.0
    %901 = vmatprep.subr.mxu0 0.0
    %902 = vmatpush1.msra.mxu0 0.0
    %903 = vmatprep.subr.mxu0 0.0
    %904 = vmatpush1.msra.mxu0 0.0
    %905 = vmatprep.subr.mxu0 0.0
    %906 = vmatpush1.msra.mxu0 0.0
    %907 = vmatprep.subr.mxu0 0.0
    %908 = vmatpush1.msra.mxu0 0.0
    %909 = vmatprep.subr.mxu0 0.0
    %910 = vmatpush1.msra.mxu0 0.0
    %911 = vmatprep.subr.mxu0 0.0
    %912 = vmatpush1.msra.mxu0 0.0
    %913 = vmatprep.subr.mxu0 0.0
    %914 = vmatpush1.msra.mxu0 0.0
    %915 = vmatprep.subr.mxu0 0.0
    %916 = vmatpush1.msra.mxu0 0.0
    %917 = vmatprep.subr.mxu0 0.0
    %918 = vmatpush1.msra.mxu0 0.0
    %919 = vmatprep.subr.mxu0 0.0
    %920 = vmatpush1.msra.mxu0 0.0
    %921 = vmatprep.subr.mxu0 0.0
    %922 = vmatpush1.msra.mxu0 0.0
    %923 = vmatprep.subr.mxu0 0.0
    %924 = vmatpush1.msra.mxu0 0.0
    %925 = vmatprep.subr.mxu0 0.0
    %926 = vmatpush1.msra.mxu0 0.0
    %927 = vmatprep.mubr.f32.mxu0 0.0
    %928 = vmatmul.mubr.f32.gmra.mrb[0].mxu0 %v859
    %v929 = vpop.f32.mrb[0].mxu0
    %v930 = vadd.f32 %v851, %v929
    %v931 = vpop.f32.mrb[0].mxu0
    %932 = vmatprep.mubr.f32.mxu0 0.0
    %933 = vmatmul.mubr.f32.gmra.mrb[0].mxu0 %v861
    %v934 = vpop.f32.mrb[0].mxu0
    %v935 = vadd.f32 %v851, %v934
    %v936 = vpop.f32.mrb[0].mxu0
    %937 = vdwg.mxu0
    %v942 = vunpack.c.l.b16 %v200
    %v943 = vunpack.c.l.b16 %v201
    %v944 = vunpack.c.l.b16 %v202
    %v945 = vunpack.c.l.b16 %v203
    %v946 = vpack.c.b16 %v943, %v942
    %v947 = vpack.c.b16 %v945, %v944
    %950 = vmatprep.subr.bf16.mxu0 0
    %951 = vmatpush1.bf16.msra.mxu0 %v946
    %952 = vmatprep.subr.bf16.mxu0 0
    %953 = vmatpush1.bf16.msra.mxu0 %v947
    %954 = vmatprep.subr.bf16.mxu0 0
    %955 = vmatpush1.bf16.msra.mxu0 0
    %956 = vmatprep.subr.bf16.mxu0 0
    %957 = vmatpush1.bf16.msra.mxu0 0
    %958 = vmatprep.subr.bf16.mxu0 0
    %959 = vmatpush1.bf16.msra.mxu0 0
    %960 = vmatprep.subr.bf16.mxu0 0
    %961 = vmatpush1.bf16.msra.mxu0 0
    %962 = vmatprep.subr.bf16.mxu0 0
    %963 = vmatpush1.bf16.msra.mxu0 0
    %964 = vmatprep.subr.bf16.mxu0 0
    %965 = vmatpush1.bf16.msra.mxu0 0
    %966 = vmatprep.subr.bf16.mxu0 0
    %967 = vmatpush1.bf16.msra.mxu0 0
    %968 = vmatprep.subr.bf16.mxu0 0
    %969 = vmatpush1.bf16.msra.mxu0 0
    %970 = vmatprep.subr.bf16.mxu0 0
    %971 = vmatpush1.bf16.msra.mxu0 0
    %972 = vmatprep.subr.bf16.mxu0 0
    %973 = vmatpush1.bf16.msra.mxu0 0
    %974 = vmatprep.subr.bf16.mxu0 0
    %975 = vmatpush1.bf16.msra.mxu0 0
    %976 = vmatprep.subr.bf16.mxu0 0
    %977 = vmatpush1.bf16.msra.mxu0 0
    %978 = vmatprep.subr.bf16.mxu0 0
    %979 = vmatpush1.bf16.msra.mxu0 0
    %980 = vmatprep.subr.bf16.mxu0 0
    %981 = vmatpush1.bf16.msra.mxu0 0
    %982 = vmatprep.mubr.bf16.mxu0 0
    %983 = vmatmul.mubr.bf16.gmra.mrb[0].mxu0 %v218
    %v984 = vpop.f32.mrb[0].mxu0
    %v985 = vadd.f32 0.0, %v984
    %v986 = vpop.f32.mrb[0].mxu0
    %v987 = vpop.f32.mrb[0].mxu0
    %v988 = vpop.f32.mrb[0].mxu0
    %989 = vdwg.mxu0
    %v990 = vadd.f32 %v930, %v985
    %v991 = vxor.u32 %v990, 2147483648
    %v992 = vmul.f32 %v991, 1.442695
    %v993 = vpow.pop %v992
    %v994 = vadd.f32 %v993, 1.0
    %v995 = vrcp.pop %v994
    %v996 = vmul.f32 1.0, %v995
    %v997 = vtanh.pop %v990
    %v998 = vmul.f32 %v996, 0.0
    %1000 = vrot.lane.b32.xlu0 %v997, 64
    %v1001 = vpop.permute.xlu0 %1000
    %v1003 = vmul.f32 %v996, %v1001
    %1005 = vrot.lane.b32.xlu0 %v1003, 32
    %v1006 = vpop.permute.xlu0 %1005
    %v1008 = vadd.f32 %v998, %v1006
    %v1009 = vtanh.pop %v1008
    %1011 = vrot.lane.b32.xlu0 %v1009, 64
    %v1012 = vpop.permute.xlu0 %1011
    %v1014 = vmul.f32 %v996, %v1012
    %v1015 = vpack.c.bf16 %v1014, %v1014
    %1017 = vrot.lane.b32.xlu0 %v1015, 32
    %v1018 = vpop.permute.xlu0 %1017
    %v1020 = vsel %vm216, %v1018, 0
    %1022 = vmatprep.subr.bf16.mxu0 0
    %1023 = vmatpush1.bf16.msra.mxu0 %v946
    %1024 = vmatprep.subr.bf16.mxu0 0
    %1025 = vmatpush1.bf16.msra.mxu0 %v947
    %1026 = vmatprep.subr.bf16.mxu0 0
    %1027 = vmatpush1.bf16.msra.mxu0 0
    %1028 = vmatprep.subr.bf16.mxu0 0
    %1029 = vmatpush1.bf16.msra.mxu0 0
    %1030 = vmatprep.subr.bf16.mxu0 0
    %1031 = vmatpush1.bf16.msra.mxu0 0
    %1032 = vmatprep.subr.bf16.mxu0 0
    %1033 = vmatpush1.bf16.msra.mxu0 0
    %1034 = vmatprep.subr.bf16.mxu0 0
    %1035 = vmatpush1.bf16.msra.mxu0 0
    %1036 = vmatprep.subr.bf16.mxu0 0
    %1037 = vmatpush1.bf16.msra.mxu0 0
    %1038 = vmatprep.subr.bf16.mxu0 0
    %1039 = vmatpush1.bf16.msra.mxu0 0
    %1040 = vmatprep.subr.bf16.mxu0 0
    %1041 = vmatpush1.bf16.msra.mxu0 0
    %1042 = vmatprep.subr.bf16.mxu0 0
    %1043 = vmatpush1.bf16.msra.mxu0 0
    %1044 = vmatprep.subr.bf16.mxu0 0
    %1045 = vmatpush1.bf16.msra.mxu0 0
    %1046 = vmatprep.subr.bf16.mxu0 0
    %1047 = vmatpush1.bf16.msra.mxu0 0
    %1048 = vmatprep.subr.bf16.mxu0 0
    %1049 = vmatpush1.bf16.msra.mxu0 0
    %1050 = vmatprep.subr.bf16.mxu0 0
    %1051 = vmatpush1.bf16.msra.mxu0 0
    %1052 = vmatprep.subr.bf16.mxu0 0
    %1053 = vmatpush1.bf16.msra.mxu0 0
    %1054 = vmatprep.mubr.bf16.mxu0 0
    %1055 = vmatmul.mubr.bf16.gmra.mrb[0].mxu0 %v1020
    %v1056 = vpop.f32.mrb[0].mxu0
    %v1057 = vadd.f32 0.0, %v1056
    %v1058 = vpop.f32.mrb[0].mxu0
    %v1059 = vpop.f32.mrb[0].mxu0
    %v1060 = vpop.f32.mrb[0].mxu0
    %1061 = vdwg.mxu0
    %v1063 = vrot.slane %v1057, 6
    %v1065 = vadd.f32 %v930, %v1063
    %v1066 = vxor.u32 %v1065, 2147483648
    %v1067 = vmul.f32 %v1066, 1.442695
    %v1068 = vpow.pop %v1067
    %v1069 = vadd.f32 %v1068, 1.0
    %v1070 = vrcp.pop %v1069
    %v1071 = vmul.f32 1.0, %v1070
    %v1072 = vtanh.pop %v1065
    %v1074 = vrot.slane %v1008, 6
    %v1076 = vmul.f32 %v1071, %v1074
    %1078 = vrot.lane.b32.xlu0 %v1072, 64
    %v1079 = vpop.permute.xlu0 %1078
    %v1081 = vmul.f32 %v1071, %v1079
    %1083 = vrot.lane.b32.xlu0 %v1081, 32
    %v1084 = vpop.permute.xlu0 %1083
    %v1086 = vadd.f32 %v1076, %v1084
    %v1087 = vtanh.pop %v1086
    %1089 = vrot.lane.b32.xlu0 %v1087, 64
    %v1090 = vpop.permute.xlu0 %1089
    %v1092 = vmul.f32 %v1071, %v1090
    %v1093 = vpack.c.bf16 %v1092, %v1092
    %v1095 = vrot.slane %v1093, 1
    %1096 = vrot.lane.b32.xlu0 %v1095, 32
    %v1097 = vpop.permute.xlu0 %1096
    %v1099 = vsel %vm216, %v1097, 0
    %1101 = vmatprep.subr.bf16.mxu0 0
    %1102 = vmatpush1.bf16.msra.mxu0 %v946
    %1103 = vmatprep.subr.bf16.mxu0 0
    %1104 = vmatpush1.bf16.msra.mxu0 %v947
    %1105 = vmatprep.subr.bf16.mxu0 0
    %1106 = vmatpush1.bf16.msra.mxu0 0
    %1107 = vmatprep.subr.bf16.mxu0 0
    %1108 = vmatpush1.bf16.msra.mxu0 0
    %1109 = vmatprep.subr.bf16.mxu0 0
    %1110 = vmatpush1.bf16.msra.mxu0 0
    %1111 = vmatprep.subr.bf16.mxu0 0
    %1112 = vmatpush1.bf16.msra.mxu0 0
    %1113 = vmatprep.subr.bf16.mxu0 0
    %1114 = vmatpush1.bf16.msra.mxu0 0
    %1115 = vmatprep.subr.bf16.mxu0 0
    %1116 = vmatpush1.bf16.msra.mxu0 0
    %1117 = vmatprep.subr.bf16.mxu0 0
    %1118 = vmatpush1.bf16.msra.mxu0 0
    %1119 = vmatprep.subr.bf16.mxu0 0
    %1120 = vmatpush1.bf16.msra.mxu0 0
    %1121 = vmatprep.subr.bf16.mxu0 0
    %1122 = vmatpush1.bf16.msra.mxu0 0
    %1123 = vmatprep.subr.bf16.mxu0 0
    %1124 = vmatpush1.bf16.msra.mxu0 0
    %1125 = vmatprep.subr.bf16.mxu0 0
    %1126 = vmatpush1.bf16.msra.mxu0 0
    %1127 = vmatprep.subr.bf16.mxu0 0
    %1128 = vmatpush1.bf16.msra.mxu0 0
    %1129 = vmatprep.subr.bf16.mxu0 0
    %1130 = vmatpush1.bf16.msra.mxu0 0
    %1131 = vmatprep.subr.bf16.mxu0 0
    %1132 = vmatpush1.bf16.msra.mxu0 0
    %1133 = vmatprep.mubr.bf16.mxu0 0
    %1134 = vmatmul.mubr.bf16.gmra.mrb[0].mxu0 %v1099
    %v1135 = vpop.f32.mrb[0].mxu0
    %v1136 = vadd.f32 0.0, %v1135
    %v1137 = vpop.f32.mrb[0].mxu0
    %v1138 = vpop.f32.mrb[0].mxu0
    %v1139 = vpop.f32.mrb[0].mxu0
    %1140 = vdwg.mxu0
    %v1142 = vrot.slane %v1136, 4
    %v1144 = vadd.f32 %v930, %v1142
    %v1145 = vxor.u32 %v1144, 2147483648
    %v1146 = vmul.f32 %v1145, 1.442695
    %v1147 = vpow.pop %v1146
    %v1148 = vadd.f32 %v1147, 1.0
    %v1149 = vrcp.pop %v1148
    %v1150 = vmul.f32 1.0, %v1149
    %v1151 = vtanh.pop %v1144
    %v1153 = vrot.slane %v1086, 6
    %v1155 = vmul.f32 %v1150, %v1153
    %1157 = vrot.lane.b32.xlu0 %v1151, 64
    %v1158 = vpop.permute.xlu0 %1157
    %v1160 = vmul.f32 %v1150, %v1158
    %1162 = vrot.lane.b32.xlu0 %v1160, 32
    %v1163 = vpop.permute.xlu0 %1162
    %v1165 = vadd.f32 %v1155, %v1163
    %v1166 = vtanh.pop %v1165
    %1168 = vrot.lane.b32.xlu0 %v1166, 64
    %v1169 = vpop.permute.xlu0 %1168
    %v1171 = vmul.f32 %v1150, %v1169
    %v1172 = vpack.c.bf16 %v1171, %v1171
    %v1174 = vrot.slane %v1172, 2
    %1175 = vrot.lane.b32.xlu0 %v1174, 32
    %v1176 = vpop.permute.xlu0 %1175
    %v1178 = vsel %vm216, %v1176, 0
    %1180 = vmatprep.subr.bf16.mxu0 0
    %1181 = vmatpush1.bf16.msra.mxu0 %v946
    %1182 = vmatprep.subr.bf16.mxu0 0
    %1183 = vmatpush1.bf16.msra.mxu0 %v947
    %1184 = vmatprep.subr.bf16.mxu0 0
    %1185 = vmatpush1.bf16.msra.mxu0 0
    %1186 = vmatprep.subr.bf16.mxu0 0
    %1187 = vmatpush1.bf16.msra.mxu0 0
    %1188 = vmatprep.subr.bf16.mxu0 0
    %1189 = vmatpush1.bf16.msra.mxu0 0
    %1190 = vmatprep.subr.bf16.mxu0 0
    %1191 = vmatpush1.bf16.msra.mxu0 0
    %1192 = vmatprep.subr.bf16.mxu0 0
    %1193 = vmatpush1.bf16.msra.mxu0 0
    %1194 = vmatprep.subr.bf16.mxu0 0
    %1195 = vmatpush1.bf16.msra.mxu0 0
    %1196 = vmatprep.subr.bf16.mxu0 0
    %1197 = vmatpush1.bf16.msra.mxu0 0
    %1198 = vmatprep.subr.bf16.mxu0 0
    %1199 = vmatpush1.bf16.msra.mxu0 0
    %1200 = vmatprep.subr.bf16.mxu0 0
    %1201 = vmatpush1.bf16.msra.mxu0 0
    %1202 = vmatprep.subr.bf16.mxu0 0
    %1203 = vmatpush1.bf16.msra.mxu0 0
    %1204 = vmatprep.subr.bf16.mxu0 0
    %1205 = vmatpush1.bf16.msra.mxu0 0
    %1206 = vmatprep.subr.bf16.mxu0 0
    %1207 = vmatpush1.bf16.msra.mxu0 0
    %1208 = vmatprep.subr.bf16.mxu0 0
    %1209 = vmatpush1.bf16.msra.mxu0 0
    %1210 = vmatprep.subr.bf16.mxu0 0
    %1211 = vmatpush1.bf16.msra.mxu0 0
    %1212 = vmatprep.mubr.bf16.mxu0 0
    %1213 = vmatmul.mubr.bf16.gmra.mrb[0].mxu0 %v1178
    %v1214 = vpop.f32.mrb[0].mxu0
    %v1215 = vadd.f32 0.0, %v1214
    %v1216 = vpop.f32.mrb[0].mxu0
    %v1217 = vpop.f32.mrb[0].mxu0
    %v1218 = vpop.f32.mrb[0].mxu0
    %1219 = vdwg.mxu0
    %v1221 = vrot.slane %v1215, 2
    %v1223 = vadd.f32 %v930, %v1221
    %v1224 = vxor.u32 %v1223, 2147483648
    %v1225 = vmul.f32 %v1224, 1.442695
    %v1226 = vpow.pop %v1225
    %v1227 = vadd.f32 %v1226, 1.0
    %v1228 = vrcp.pop %v1227
    %v1229 = vmul.f32 1.0, %v1228
    %v1230 = vtanh.pop %v1223
    %v1232 = vrot.slane %v1165, 6
    %v1234 = vmul.f32 %v1229, %v1232
    %1236 = vrot.lane.b32.xlu0 %v1230, 64
    %v1237 = vpop.permute.xlu0 %1236
    %v1239 = vmul.f32 %v1229, %v1237
    %1241 = vrot.lane.b32.xlu0 %v1239, 32
    %v1242 = vpop.permute.xlu0 %1241
    %v1244 = vadd.f32 %v1234, %v1242
    %v1245 = vtanh.pop %v1244
    %1247 = vrot.lane.b32.xlu0 %v1245, 64
    %v1248 = vpop.permute.xlu0 %1247
    %v1250 = vmul.f32 %v1229, %v1248
    %v1251 = vpack.c.bf16 %v1250, %v1250
    %v1253 = vrot.slane %v1251, 3
    %1254 = vrot.lane.b32.xlu0 %v1253, 32
    %v1255 = vpop.permute.xlu0 %1254
    %v1257 = vsel %vm216, %v1255, 0
    %1259 = vmatprep.subr.bf16.mxu0 0
    %1260 = vmatpush1.bf16.msra.mxu0 %v946
    %1261 = vmatprep.subr.bf16.mxu0 0
    %1262 = vmatpush1.bf16.msra.mxu0 %v947
    %1263 = vmatprep.subr.bf16.mxu0 0
    %1264 = vmatpush1.bf16.msra.mxu0 0
    %1265 = vmatprep.subr.bf16.mxu0 0
    %1266 = vmatpush1.bf16.msra.mxu0 0
    %1267 = vmatprep.subr.bf16.mxu0 0
    %1268 = vmatpush1.bf16.msra.mxu0 0
    %1269 = vmatprep.subr.bf16.mxu0 0
    %1270 = vmatpush1.bf16.msra.mxu0 0
    %1271 = vmatprep.subr.bf16.mxu0 0
    %1272 = vmatpush1.bf16.msra.mxu0 0
    %1273 = vmatprep.subr.bf16.mxu0 0
    %1274 = vmatpush1.bf16.msra.mxu0 0
    %1275 = vmatprep.subr.bf16.mxu0 0
    %1276 = vmatpush1.bf16.msra.mxu0 0
    %1277 = vmatprep.subr.bf16.mxu0 0
    %1278 = vmatpush1.bf16.msra.mxu0 0
    %1279 = vmatprep.subr.bf16.mxu0 0
    %1280 = vmatpush1.bf16.msra.mxu0 0
    %1281 = vmatprep.subr.bf16.mxu0 0
    %1282 = vmatpush1.bf16.msra.mxu0 0
    %1283 = vmatprep.subr.bf16.mxu0 0
    %1284 = vmatpush1.bf16.msra.mxu0 0
    %1285 = vmatprep.subr.bf16.mxu0 0
    %1286 = vmatpush1.bf16.msra.mxu0 0
    %1287 = vmatprep.subr.bf16.mxu0 0
    %1288 = vmatpush1.bf16.msra.mxu0 0
    %1289 = vmatprep.subr.bf16.mxu0 0
    %1290 = vmatpush1.bf16.msra.mxu0 0
    %1291 = vmatprep.mubr.bf16.mxu0 0
    %1292 = vmatmul.mubr.bf16.gmra.mrb[0].mxu0 %v1257
    %v1293 = vpop.f32.mrb[0].mxu0
    %v1294 = vadd.f32 0.0, %v1293
    %v1295 = vpop.f32.mrb[0].mxu0
    %v1296 = vpop.f32.mrb[0].mxu0
    %v1297 = vpop.f32.mrb[0].mxu0
    %1298 = vdwg.mxu0
    %v1299 = vadd.f32 %v935, %v1294
    %v1300 = vxor.u32 %v1299, 2147483648
    %v1301 = vmul.f32 %v1300, 1.442695
    %v1302 = vpow.pop %v1301
    %v1303 = vadd.f32 %v1302, 1.0
    %v1304 = vrcp.pop %v1303
    %v1305 = vmul.f32 1.0, %v1304
    %v1306 = vtanh.pop %v1299
    %v1308 = vrot.slane %v1244, 6
    %v1310 = vmul.f32 %v1305, %v1308
    %1312 = vrot.lane.b32.xlu0 %v1306, 64
    %v1313 = vpop.permute.xlu0 %1312
    %v1315 = vmul.f32 %v1305, %v1313
    %1317 = vrot.lane.b32.xlu0 %v1315, 32
    %v1318 = vpop.permute.xlu0 %1317
    %v1320 = vadd.f32 %v1310, %v1318
    %v1321 = vtanh.pop %v1320
    %1323 = vrot.lane.b32.xlu0 %v1321, 64
    %v1324 = vpop.permute.xlu0 %1323
    %v1326 = vmul.f32 %v1305, %v1324
    %v1327 = vpack.c.bf16 %v1326, %v1326
    %1329 = vrot.lane.b32.xlu0 %v1327, 32
    %v1330 = vpop.permute.xlu0 %1329
    %v1332 = vsel %vm216, %v1330, 0
    %1334 = vmatprep.subr.bf16.mxu0 0
    %1335 = vmatpush1.bf16.msra.mxu0 %v946
    %1336 = vmatprep.subr.bf16.mxu0 0
    %1337 = vmatpush1.bf16.msra.mxu0 %v947
    %1338 = vmatprep.subr.bf16.mxu0 0
    %1339 = vmatpush1.bf16.msra.mxu0 0
    %1340 = vmatprep.subr.bf16.mxu0 0
    %1341 = vmatpush1.bf16.msra.mxu0 0
    %1342 = vmatprep.subr.bf16.mxu0 0
    %1343 = vmatpush1.bf16.msra.mxu0 0
    %1344 = vmatprep.subr.bf16.mxu0 0
    %1345 = vmatpush1.bf16.msra.mxu0 0
    %1346 = vmatprep.subr.bf16.mxu0 0
    %1347 = vmatpush1.bf16.msra.mxu0 0
    %1348 = vmatprep.subr.bf16.mxu0 0
    %1349 = vmatpush1.bf16.msra.mxu0 0
    %1350 = vmatprep.subr.bf16.mxu0 0
    %1351 = vmatpush1.bf16.msra.mxu0 0
    %1352 = vmatprep.subr.bf16.mxu0 0
    %1353 = vmatpush1.bf16.msra.mxu0 0
    %1354 = vmatprep.subr.bf16.mxu0 0
    %1355 = vmatpush1.bf16.msra.mxu0 0
    %1356 = vmatprep.subr.bf16.mxu0 0
    %1357 = vmatpush1.bf16.msra.mxu0 0
    %1358 = vmatprep.subr.bf16.mxu0 0
    %1359 = vmatpush1.bf16.msra.mxu0 0
    %1360 = vmatprep.subr.bf16.mxu0 0
    %1361 = vmatpush1.bf16.msra.mxu0 0
    %1362 = vmatprep.subr.bf16.mxu0 0
    %1363 = vmatpush1.bf16.msra.mxu0 0
    %1364 = vmatprep.subr.bf16.mxu0 0
    %1365 = vmatpush1.bf16.msra.mxu0 0
    %1366 = vmatprep.mubr.bf16.mxu0 0
    %1367 = vmatmul.mubr.bf16.gmra.mrb[0].mxu0 %v1332
    %v1368 = vpop.f32.mrb[0].mxu0
    %v1369 = vadd.f32 0.0, %v1368
    %v1370 = vpop.f32.mrb[0].mxu0
    %v1371 = vpop.f32.mrb[0].mxu0
    %v1372 = vpop.f32.mrb[0].mxu0
    %1373 = vdwg.mxu0
    %v1375 = vrot.slane %v1369, 6
    %v1377 = vadd.f32 %v935, %v1375
    %v1378 = vxor.u32 %v1377, 2147483648
    %v1379 = vmul.f32 %v1378, 1.442695
    %v1380 = vpow.pop %v1379
    %v1381 = vadd.f32 %v1380, 1.0
    %v1382 = vrcp.pop %v1381
    %v1383 = vmul.f32 1.0, %v1382
    %v1384 = vtanh.pop %v1377
    %v1386 = vrot.slane %v1320, 6
    %v1388 = vmul.f32 %v1383, %v1386
    %1390 = vrot.lane.b32.xlu0 %v1384, 64
    %v1391 = vpop.permute.xlu0 %1390
    %v1393 = vmul.f32 %v1383, %v1391
    %1395 = vrot.lane.b32.xlu0 %v1393, 32
    %v1396 = vpop.permute.xlu0 %1395
    %v1398 = vadd.f32 %v1388, %v1396
    %v1399 = vtanh.pop %v1398
    %1401 = vrot.lane.b32.xlu0 %v1399, 64
    %v1402 = vpop.permute.xlu0 %1401
    %v1404 = vmul.f32 %v1383, %v1402
    %v1405 = vpack.c.bf16 %v1404, %v1404
    %v1407 = vrot.slane %v1405, 1
    %1408 = vrot.lane.b32.xlu0 %v1407, 32
    %v1409 = vpop.permute.xlu0 %1408
    %v1411 = vsel %vm216, %v1409, 0
    %1413 = vmatprep.subr.bf16.mxu0 0
    %1414 = vmatpush1.bf16.msra.mxu0 %v946
    %1415 = vmatprep.subr.bf16.mxu0 0
    %1416 = vmatpush1.bf16.msra.mxu0 %v947
    %1417 = vmatprep.subr.bf16.mxu0 0
    %1418 = vmatpush1.bf16.msra.mxu0 0
    %1419 = vmatprep.subr.bf16.mxu0 0
    %1420 = vmatpush1.bf16.msra.mxu0 0
    %1421 = vmatprep.subr.bf16.mxu0 0
    %1422 = vmatpush1.bf16.msra.mxu0 0
    %1423 = vmatprep.subr.bf16.mxu0 0
    %1424 = vmatpush1.bf16.msra.mxu0 0
    %1425 = vmatprep.subr.bf16.mxu0 0
    %1426 = vmatpush1.bf16.msra.mxu0 0
    %1427 = vmatprep.subr.bf16.mxu0 0
    %1428 = vmatpush1.bf16.msra.mxu0 0
    %1429 = vmatprep.subr.bf16.mxu0 0
    %1430 = vmatpush1.bf16.msra.mxu0 0
    %1431 = vmatprep.subr.bf16.mxu0 0
    %1432 = vmatpush1.bf16.msra.mxu0 0
    %1433 = vmatprep.subr.bf16.mxu0 0
    %1434 = vmatpush1.bf16.msra.mxu0 0
    %1435 = vmatprep.subr.bf16.mxu0 0
    %1436 = vmatpush1.bf16.msra.mxu0 0
    %1437 = vmatprep.subr.bf16.mxu0 0
    %1438 = vmatpush1.bf16.msra.mxu0 0
    %1439 = vmatprep.subr.bf16.mxu0 0
    %1440 = vmatpush1.bf16.msra.mxu0 0
    %1441 = vmatprep.subr.bf16.mxu0 0
    %1442 = vmatpush1.bf16.msra.mxu0 0
    %1443 = vmatprep.subr.bf16.mxu0 0
    %1444 = vmatpush1.bf16.msra.mxu0 0
    %1445 = vmatprep.mubr.bf16.mxu0 0
    %1446 = vmatmul.mubr.bf16.gmra.mrb[0].mxu0 %v1411
    %v1447 = vpop.f32.mrb[0].mxu0
    %v1448 = vadd.f32 0.0, %v1447
    %v1449 = vpop.f32.mrb[0].mxu0
    %v1450 = vpop.f32.mrb[0].mxu0
    %v1451 = vpop.f32.mrb[0].mxu0
    %1452 = vdwg.mxu0
    %v1454 = vrot.slane %v1448, 4
    %v1456 = vadd.f32 %v935, %v1454
    %v1457 = vxor.u32 %v1456, 2147483648
    %v1458 = vmul.f32 %v1457, 1.442695
    %v1459 = vpow.pop %v1458
    %v1460 = vadd.f32 %v1459, 1.0
    %v1461 = vrcp.pop %v1460
    %v1462 = vmul.f32 1.0, %v1461
    %v1463 = vtanh.pop %v1456
    %v1465 = vrot.slane %v1398, 6
    %v1467 = vmul.f32 %v1462, %v1465
    %1469 = vrot.lane.b32.xlu0 %v1463, 64
    %v1470 = vpop.permute.xlu0 %1469
    %v1472 = vmul.f32 %v1462, %v1470
    %1474 = vrot.lane.b32.xlu0 %v1472, 32
    %v1475 = vpop.permute.xlu0 %1474
    %v1477 = vadd.f32 %v1467, %v1475
    %v1478 = vtanh.pop %v1477
    %1480 = vrot.lane.b32.xlu0 %v1478, 64
    %v1481 = vpop.permute.xlu0 %1480
    %v1483 = vmul.f32 %v1462, %v1481
    %v1484 = vpack.c.bf16 %v1483, %v1483
    %v1486 = vrot.slane %v1484, 2
    %1487 = vrot.lane.b32.xlu0 %v1486, 32
    %v1488 = vpop.permute.xlu0 %1487
    %v1490 = vsel %vm216, %v1488, 0
    %1492 = vmatprep.subr.bf16.mxu0 0
    %1493 = vmatpush1.bf16.msra.mxu0 %v946
    %1494 = vmatprep.subr.bf16.mxu0 0
    %1495 = vmatpush1.bf16.msra.mxu0 %v947
    %1496 = vmatprep.subr.bf16.mxu0 0
    %1497 = vmatpush1.bf16.msra.mxu0 0
    %1498 = vmatprep.subr.bf16.mxu0 0
    %1499 = vmatpush1.bf16.msra.mxu0 0
    %1500 = vmatprep.subr.bf16.mxu0 0
    %1501 = vmatpush1.bf16.msra.mxu0 0
    %1502 = vmatprep.subr.bf16.mxu0 0
    %1503 = vmatpush1.bf16.msra.mxu0 0
    %1504 = vmatprep.subr.bf16.mxu0 0
    %1505 = vmatpush1.bf16.msra.mxu0 0
    %1506 = vmatprep.subr.bf16.mxu0 0
    %1507 = vmatpush1.bf16.msra.mxu0 0
    %1508 = vmatprep.subr.bf16.mxu0 0
    %1509 = vmatpush1.bf16.msra.mxu0 0
    %1510 = vmatprep.subr.bf16.mxu0 0
    %1511 = vmatpush1.bf16.msra.mxu0 0
    %1512 = vmatprep.subr.bf16.mxu0 0
    %1513 = vmatpush1.bf16.msra.mxu0 0
    %1514 = vmatprep.subr.bf16.mxu0 0
    %1515 = vmatpush1.bf16.msra.mxu0 0
    %1516 = vmatprep.subr.bf16.mxu0 0
    %1517 = vmatpush1.bf16.msra.mxu0 0
    %1518 = vmatprep.subr.bf16.mxu0 0
    %1519 = vmatpush1.bf16.msra.mxu0 0
    %1520 = vmatprep.subr.bf16.mxu0 0
    %1521 = vmatpush1.bf16.msra.mxu0 0
    %1522 = vmatprep.subr.bf16.mxu0 0
    %1523 = vmatpush1.bf16.msra.mxu0 0
    %1524 = vmatprep.mubr.bf16.mxu0 0
    %1525 = vmatmul.mubr.bf16.gmra.mrb[0].mxu0 %v1490
    %v1526 = vpop.f32.mrb[0].mxu0
    %v1527 = vadd.f32 0.0, %v1526
    %v1528 = vpop.f32.mrb[0].mxu0
    %v1529 = vpop.f32.mrb[0].mxu0
    %v1530 = vpop.f32.mrb[0].mxu0
    %1531 = vdwg.mxu0
    %v1533 = vrot.slane %v1527, 2
    %v1535 = vadd.f32 %v935, %v1533
    %v1536 = vxor.u32 %v1535, 2147483648
    %v1537 = vmul.f32 %v1536, 1.442695
    %v1538 = vpow.pop %v1537
    %v1539 = vadd.f32 %v1538, 1.0
    %v1540 = vrcp.pop %v1539
    %v1541 = vmul.f32 1.0, %v1540
    %v1542 = vtanh.pop %v1535
    %v1544 = vrot.slane %v1477, 6
    %v1546 = vmul.f32 %v1541, %v1544
    %1548 = vrot.lane.b32.xlu0 %v1542, 64
    %v1549 = vpop.permute.xlu0 %1548
    %v1551 = vmul.f32 %v1541, %v1549
    %1553 = vrot.lane.b32.xlu0 %v1551, 32
    %v1554 = vpop.permute.xlu0 %1553
    %v1556 = vadd.f32 %v1546, %v1554
    %v1557 = vtanh.pop %v1556
    %1559 = vrot.lane.b32.xlu0 %v1557, 64
    %v1560 = vpop.permute.xlu0 %1559
    %v1562 = vmul.f32 %v1541, %v1560
    %v1564 = vrot.slane %v1250, 7
    %v1567 = vrot.slane %v1562, 6
    %vm1569 = vcmask 1040384
    %v1570 = vsel %vm1569, %v1564, %v1567
    %v1571 = vld [vmem:[#allocation8] sm:$0x1]
    %v1573 = vlaneseq
    %v1574 = vshrl.u32 %v1573, 7
    %v1575 = vsub.s32 0, %v1574
    %v1576 = vrot.slane %v1571, %v1575
    %1577 = vrot.lane.b32.xlu0 %v1576, 96
    %v1578 = vpop.permute.xlu0 %1577
    %v1580 = vmul.f32 %v1570, %v1578
    %1582 = vrot.lane.b32.xlu0 %v1580, 32
    %v1583 = vpop.permute.xlu0 %1582
    %vm1585 = vcmask 254976
    %v1586 = vsel %vm1585, %v1583, 0.0
    %1587 = vadd.xlane.f32.xlu0 %v1586
    %v1588 = vpop.xlane.xlu0 %1587
    %v1589 = vld [vmem:[#allocation2] sm:$0x1]
    %v1591 = vlaneseq
    %v1592 = vshrl.u32 %v1591, 7
    %v1593 = vsub.s32 0, %v1592
    %v1594 = vrot.slane %v1589, %v1593
    %v1596 = vadd.f32 %v1588, %v1594
    %v1597 = vmax.f32 %v1596, 0.0
    %1599 = vrot.lane.b32.xlu0 %v832, 32
    %v1600 = vpop.permute.xlu0 %1599
    %1602 = vrot.lane.b32.xlu0 %v1562, 64
    %v1603 = vpop.permute.xlu0 %1602
    %1606 = vrot.lane.b32.xlu0 %v826, 32
    %v1607 = vpop.permute.xlu0 %1606
    %1610 = vrot.lane.b32.xlu0 %v1556, 64
    %v1611 = vpop.permute.xlu0 %1610
    %v1613 = vsel %vm216, %v1600, %v1603
    %vm1614 = vcmask 523264
    %v1615 = vsel %vm1614, %v1613, %v1607
    %vm1616 = vcmask 785408
    %v1617 = vsel %vm1616, %v1615, %v1611
    %1619 = vset.pattern.permute.xlu0 0
    %1620 = vperm.xlu0 %1619, %v1597
    %v1621 = vpop.permute.xlu0 %1620
    %v1623 = vrot.slane %v1617, 6
    %v1625 = vrot.slane %v1621, 6
    %v1627 = vsel %vm833, %v1623, %v1625
    %v1628 = vsel %vm835, %v1627, 0.0
    %1629 = vst [vmem:[%s9] sm:$0xff] %v1628
    // Predicated region
    $region54: #{lstm_model_forward.1} parent=1 // pred_check
      _
    $region55: #{lstm_model_forward.1} parent=1 // pred_check_branch
      %1631 = sbr.rel (0) target = $region57
    $region56: #{lstm_model_forward.1} parent=1 // pred_region
      _
    $region57: #{lstm_model_forward.1} parent=1 // pred_fallthru
      _
    // Predicated region
    $region58: #{lstm_model_forward.1} parent=1 // pred_check
      _
    $region59: #{lstm_model_forward.1} parent=1 // pred_check_branch
      %1633 = sbr.rel (0) target = $region61
    $region60: #{lstm_model_forward.1} parent=1 // pred_region
      _
    $region61: #{lstm_model_forward.1} parent=1 // pred_fallthru
      _
    %1634 = vsyncpa [#allocation4], 1
    %1635 = vsyncpa [#allocation6], 1
    %1636 = vsyncpa [#allocation9], 1

</llo_original>
